<compile_context>
chip_gen: v6e
topology: v6e:2x2x1
jax: 0.10.0
libtpu: 0.0.40
codegen_flags: <defaults>
</compile_context>

<pallas_src>
import functools
import math

import jax
import jax.numpy as jnp
from jax import lax
from jax.experimental import pallas as pl
from jax.experimental.pallas import tpu as pltpu

# ----------------------------- config ---------------------------------------
B = 2          # batch
S = 8          # sequence length
D_MODEL = 32   # d_model
HEADS = 2      # attention heads
HIDDEN = 64    # FFN hidden dim
N_LAYERS = 2   # n encoder layers
EPS = 1e-6
# TODO(synk): dropout_rate is unused — dropout is identity in eval/inference mode.


# ----------------------------- kernel ---------------------------------------
def encoder_layer_kernel(
    x_ref, mask_ref, negb_ref,
    wq_ref, bq_ref, wk_ref, bk_ref, wv_ref, bv_ref, wo_ref, bo_ref,
    g1_ref, be1_ref, w1_ref, b1_ref, w2_ref, b2_ref, g2_ref, be2_ref,
    out_ref, *, heads,
):
    """One (batch b, layer l) grid step of the FFT-block encoder."""
    l = pl.program_id(1)

    # Layer 0: seed the per-batch carry. out_ref's block index depends only on
    # the batch axis, so it stays VMEM-resident across the whole layer axis.
    @pl.when(l == 0)
    def _():
        out_ref[...] = x_ref[...]

    x = out_ref[...].astype(jnp.float32)          # (S, D) carried activation
    mask = mask_ref[...].astype(jnp.float32)      # (S, 1) 1=valid / 0=pad
    negb = negb_ref[...]                          # (1, S) -1e9 on padded keys

    seq, d = x.shape
    hd = d // heads
    scale = 1.0 / math.sqrt(hd)

    def mm(a, w):
        # Matmul in the weight's dtype (f32 here; bf16 at production widths on
        # v6e/v7x), always accumulating in f32 on the MXU.
        return jnp.dot(a.astype(w.dtype), w, preferred_element_type=jnp.float32)

    # ---- multi-head self-attention -----------------------------------------
    q = mm(x, wq_ref[...]) + bq_ref[...]
    k = mm(x, wk_ref[...]) + bk_ref[...]
    v = mm(x, wv_ref[...]) + bv_ref[...]

    wo = wo_ref[...]
    attn = jnp.zeros((seq, d), jnp.float32)
    # heads is tiny (2): static loop, with the output projection folded per
    # head so no narrow head-slice scratch stores / extra VMEM slab are needed.
    for h in range(heads):
        c0 = h * hd
        qh = q[:, c0:c0 + hd]
        kh = k[:, c0:c0 + hd]
        vh = v[:, c0:c0 + hd]
        # q @ k.T via dot_general (contract last dims; no explicit transpose)
        s = lax.dot_general(qh, kh, (((1,), (1,)), ((), ())),
                            preferred_element_type=jnp.float32) * scale + negb
        s = s - jnp.max(s, axis=-1, keepdims=True)
        p = jnp.exp(s)
        p = p / jnp.sum(p, axis=-1, keepdims=True)          # exact softmax
        ctx = jnp.dot(p, vh, preferred_element_type=jnp.float32)   # (S, hd)
        attn = attn + mm(ctx, wo[c0:c0 + hd, :])            # fold W_o per head
    attn = attn + bo_ref[...]

    # ---- residual + LayerNorm 1 + pad-mask ----------------------------------
    y = x + attn
    mu = jnp.mean(y, axis=-1, keepdims=True)
    var = jnp.mean((y - mu) ** 2, axis=-1, keepdims=True)
    y = (y - mu) * lax.rsqrt(var + EPS) * g1_ref[...] + be1_ref[...]
    y = y * mask

    # ---- position-wise FFN (ReLU activation) --------------------------------
    hmid = jnp.maximum(mm(y, w1_ref[...]) + b1_ref[...], 0.0)
    f = mm(hmid, w2_ref[...]) + b2_ref[...]

    # ---- residual + LayerNorm 2 + pad-mask ----------------------------------
    z = y + f
    mu2 = jnp.mean(z, axis=-1, keepdims=True)
    var2 = jnp.mean((z - mu2) ** 2, axis=-1, keepdims=True)
    z = (z - mu2) * lax.rsqrt(var2 + EPS) * g2_ref[...] + be2_ref[...]
    z = z * mask

    out_ref[...] = z.astype(out_ref.dtype)        # carry to next layer step


# ----------------------------- wrapper ---------------------------------------
_MATMUL_WEIGHT_IDX = (0, 2, 4, 6, 10, 12)   # wq, wk, wv, wo, w1, w2


def encoder_forward(x, mask, layer_params, *, heads=HEADS,
                    matmul_dtype=jnp.float32):
    """x: (B, S, D) f32, mask: (B, S, 1) (1.0 valid). One fused pallas_call."""
    Bx, Sx, Dx = x.shape
    n_layers = len(layer_params)
    n_params = len(layer_params[0])

    # Stack per-layer params along a leading layer axis; the layer grid axis
    # streams one layer of weights at a time (double-buffered) instead of
    # keeping every layer resident in VMEM.
    stacked = [jnp.stack([layer_params[l][i] for l in range(n_layers)])
               for i in range(n_params)]
    stacked = [s.astype(matmul_dtype) if i in _MATMUL_WEIGHT_IDX else s
               for i, s in enumerate(stacked)]

    # Wrapper-side layout plumbing only (no activation-sized broadcast copies).
    mask_f = mask.astype(jnp.float32).reshape(Bx, Sx, 1)
    neg_bias = ((1.0 - mask_f.reshape(Bx, 1, Sx)) * -1e9).astype(jnp.float32)

    def batch_spec(shape):
        nd = len(shape)
        return pl.BlockSpec((None,) + tuple(shape[1:]),
                            lambda b, l: (b,) + (0,) * (nd - 1))

    def layer_spec(shape):
        nd = len(shape)
        return pl.BlockSpec((None,) + tuple(shape[1:]),
                            lambda b, l: (l,) + (0,) * (nd - 1))

    in_specs = ([batch_spec(x.shape),
                 batch_spec(mask_f.shape),
                 batch_spec(neg_bias.shape)]
                + [layer_spec(s.shape) for s in stacked])

    kernel = functools.partial(encoder_layer_kernel, heads=heads)

    out = pl.pallas_call(
        kernel,
        out_shape=jax.ShapeDtypeStruct((Bx, Sx, Dx), x.dtype),
        grid_spec=pltpu.PrefetchScalarGridSpec(
            num_scalar_prefetch=0,
            grid=(Bx, n_layers),              # batch parallel, layer carried
            in_specs=in_specs,
            out_specs=batch_spec((Bx, Sx, Dx))),
        compiler_params=pltpu.CompilerParams(
            dimension_semantics=("parallel", "arbitrary"),
            vmem_limit_bytes=32 * 1024 * 1024),
    )(x, mask_f, neg_bias, *stacked)
    return out


# ----------------------------- param init ------------------------------------
def init_layer_params(key):
    ks = jax.random.split(key, 6)

    def lin(k, fan_in, fan_out):
        w = jax.random.normal(k, (fan_in, fan_out), jnp.float32) * (1.0 / math.sqrt(fan_in))
        b = jnp.zeros((1, fan_out), jnp.float32)
        return w, b

    wq, bq = lin(ks[0], D_MODEL, D_MODEL)
    wk, bk = lin(ks[1], D_MODEL, D_MODEL)
    wv, bv = lin(ks[2], D_MODEL, D_MODEL)
    wo, bo = lin(ks[3], D_MODEL, D_MODEL)
    g1 = jnp.ones((1, D_MODEL), jnp.float32)
    be1 = jnp.zeros((1, D_MODEL), jnp.float32)
    w1, b1 = lin(ks[4], D_MODEL, HIDDEN)
    w2, b2 = lin(ks[5], HIDDEN, D_MODEL)
    g2 = jnp.ones((1, D_MODEL), jnp.float32)
    be2 = jnp.zeros((1, D_MODEL), jnp.float32)
    return (wq, bq, wk, bk, wv, bv, wo, bo, g1, be1, w1, b1, w2, b2, g2, be2)


# ----------------------------- main -------------------------------------------
if __name__ == "__main__":
    root = jax.random.PRNGKey(0)
    k_x, k_p = jax.random.split(root)

    x = jax.random.normal(k_x, (B, S, D_MODEL), jnp.float32)

    # padding mask: batch 0 fully valid, batch 1 has last 3 positions padded
    mask2d = jnp.ones((B, S), jnp.float32)
    mask2d = mask2d.at[1, S - 3:].set(0.0)
    mask = mask2d.reshape(B, S, 1)

    layer_params = [init_layer_params(k)
                    for k in jax.random.split(k_p, N_LAYERS)]

    out = encoder_forward(x, mask, layer_params)
    jax.block_until_ready(out)
    assert out.shape == (B, S, D_MODEL)
    print("KERNEL_OK")
</pallas_src>

<mosaic_0001>
module attributes {stable_mosaic.version = 11 : i64} {
  func.func @encoder_layer_kernel(%arg0: i32, %arg1: i32, %arg2: memref<1x8x32xf32, #tpu.memory_space<vmem>>, %arg3: memref<1x8x1xf32, #tpu.memory_space<vmem>>, %arg4: memref<1x1x8xf32, #tpu.memory_space<vmem>>, %arg5: memref<1x32x32xf32, #tpu.memory_space<vmem>>, %arg6: memref<1x1x32xf32, #tpu.memory_space<vmem>>, %arg7: memref<1x32x32xf32, #tpu.memory_space<vmem>>, %arg8: memref<1x1x32xf32, #tpu.memory_space<vmem>>, %arg9: memref<1x32x32xf32, #tpu.memory_space<vmem>>, %arg10: memref<1x1x32xf32, #tpu.memory_space<vmem>>, %arg11: memref<1x32x32xf32, #tpu.memory_space<vmem>>, %arg12: memref<1x1x32xf32, #tpu.memory_space<vmem>>, %arg13: memref<1x1x32xf32, #tpu.memory_space<vmem>>, %arg14: memref<1x1x32xf32, #tpu.memory_space<vmem>>, %arg15: memref<1x32x64xf32, #tpu.memory_space<vmem>>, %arg16: memref<1x1x64xf32, #tpu.memory_space<vmem>>, %arg17: memref<1x64x32xf32, #tpu.memory_space<vmem>>, %arg18: memref<1x1x32xf32, #tpu.memory_space<vmem>>, %arg19: memref<1x1x32xf32, #tpu.memory_space<vmem>>, %arg20: memref<1x1x32xf32, #tpu.memory_space<vmem>>, %arg21: memref<1x8x32xf32, #tpu.memory_space<vmem>>) attributes {dimension_semantics = [#tpu.dimension_semantics<parallel>, #tpu.dimension_semantics<arbitrary>], iteration_bounds = array<i64: 2, 2>, scalar_prefetch = 0 : i64, scratch_operands = 0 : i64, tpu.core_type = #tpu.core_type<tc>, window_params = [{transform_indices = @transform_0, window_bounds = array<i64: 1, 8, 32>}, {transform_indices = @transform_1, window_bounds = array<i64: 1, 8, 1>}, {transform_indices = @transform_2, window_bounds = array<i64: 1, 1, 8>}, {transform_indices = @transform_3, window_bounds = array<i64: 1, 32, 32>}, {transform_indices = @transform_4, window_bounds = array<i64: 1, 1, 32>}, {transform_indices = @transform_5, window_bounds = array<i64: 1, 32, 32>}, {transform_indices = @transform_6, window_bounds = array<i64: 1, 1, 32>}, {transform_indices = @transform_7, window_bounds = array<i64: 1, 32, 32>}, {transform_indices = @transform_8, window_bounds = array<i64: 1, 1, 32>}, {transform_indices = @transform_9, window_bounds = array<i64: 1, 32, 32>}, {transform_indices = @transform_10, window_bounds = array<i64: 1, 1, 32>}, {transform_indices = @transform_11, window_bounds = array<i64: 1, 1, 32>}, {transform_indices = @transform_12, window_bounds = array<i64: 1, 1, 32>}, {transform_indices = @transform_13, window_bounds = array<i64: 1, 32, 64>}, {transform_indices = @transform_14, window_bounds = array<i64: 1, 1, 64>}, {transform_indices = @transform_15, window_bounds = array<i64: 1, 64, 32>}, {transform_indices = @transform_16, window_bounds = array<i64: 1, 1, 32>}, {transform_indices = @transform_17, window_bounds = array<i64: 1, 1, 32>}, {transform_indices = @transform_18, window_bounds = array<i64: 1, 1, 32>}, {transform_indices = @transform_19, window_bounds = array<i64: 1, 8, 32>}]} {
    %c0_i32 = arith.constant 0 : i32
    %0 = arith.cmpi eq, %arg1, %c0_i32 : i32
    %1 = arith.extui %0 : i1 to i32
    %c0_i32_0 = arith.constant 0 : i32
    %2 = arith.cmpi ne, %1, %c0_i32_0 : i32
    scf.if %2 {
      %c0_88 = arith.constant 0 : index
      %c0_89 = arith.constant 0 : index
      %c0_90 = arith.constant 0 : index
      %156 = vector.load %arg2[%c0_88, %c0_89, %c0_90] : memref<1x8x32xf32, #tpu.memory_space<vmem>>, vector<1x8x32xf32>
      %157 = vector.shape_cast %156 : vector<1x8x32xf32> to vector<8x32xf32>
      %c0_91 = arith.constant 0 : index
      %c0_92 = arith.constant 0 : index
      %c0_93 = arith.constant 0 : index
      %158 = vector.load %arg21[%c0_91, %c0_92, %c0_93] : memref<1x8x32xf32, #tpu.memory_space<vmem>>, vector<1x8x32xf32>
      %159 = vector.shape_cast %158 : vector<1x8x32xf32> to vector<8x32xf32>
      %160 = vector.shape_cast %157 : vector<8x32xf32> to vector<1x8x32xf32>
      tpu.vector_store %arg21[%c0_91, %c0_92, %c0_93], %160 {strides = array<i32>} : memref<1x8x32xf32, #tpu.memory_space<vmem>>, vector<1x8x32xf32>,
    } else {
    }
    %c0 = arith.constant 0 : index
    %c0_1 = arith.constant 0 : index
    %c0_2 = arith.constant 0 : index
    %3 = vector.load %arg21[%c0, %c0_1, %c0_2] : memref<1x8x32xf32, #tpu.memory_space<vmem>>, vector<1x8x32xf32>
    %4 = vector.shape_cast %3 : vector<1x8x32xf32> to vector<8x32xf32>
    %c0_3 = arith.constant 0 : index
    %c0_4 = arith.constant 0 : index
    %c0_5 = arith.constant 0 : index
    %5 = vector.load %arg3[%c0_3, %c0_4, %c0_5] : memref<1x8x1xf32, #tpu.memory_space<vmem>>, vector<1x8x1xf32>
    %6 = vector.shape_cast %5 : vector<1x8x1xf32> to vector<8x1xf32>
    %c0_6 = arith.constant 0 : index
    %c0_7 = arith.constant 0 : index
    %c0_8 = arith.constant 0 : index
    %7 = vector.load %arg4[%c0_6, %c0_7, %c0_8] : memref<1x1x8xf32, #tpu.memory_space<vmem>>, vector<1x1x8xf32>
    %8 = vector.shape_cast %7 : vector<1x1x8xf32> to vector<1x8xf32>
    %c0_9 = arith.constant 0 : index
    %c0_10 = arith.constant 0 : index
    %c0_11 = arith.constant 0 : index
    %9 = vector.load %arg5[%c0_9, %c0_10, %c0_11] : memref<1x32x32xf32, #tpu.memory_space<vmem>>, vector<1x32x32xf32>
    %10 = vector.shape_cast %9 : vector<1x32x32xf32> to vector<32x32xf32>
    %cst = arith.constant dense<0.000000e+00> : vector<8x32xf32>
    %11 = tpu.matmul %4, %10, %cst {dimension_numbers = #tpu.dot_dimension_numbers<[1], [0], [0], [1], [0, 0, 1, 1], [], []>} : vector<8x32xf32>, vector<32x32xf32>, vector<8x32xf32> -> vector<8x32xf32>
    %c0_12 = arith.constant 0 : index
    %c0_13 = arith.constant 0 : index
    %c0_14 = arith.constant 0 : index
    %12 = vector.load %arg6[%c0_12, %c0_13, %c0_14] : memref<1x1x32xf32, #tpu.memory_space<vmem>>, vector<1x1x32xf32>
    %13 = vector.shape_cast %12 : vector<1x1x32xf32> to vector<1x32xf32>
    %14 = vector.broadcast %13 : vector<1x32xf32> to vector<8x32xf32>
    %15 = arith.addf %11, %14 : vector<8x32xf32>
    %c0_15 = arith.constant 0 : index
    %c0_16 = arith.constant 0 : index
    %c0_17 = arith.constant 0 : index
    %16 = vector.load %arg7[%c0_15, %c0_16, %c0_17] : memref<1x32x32xf32, #tpu.memory_space<vmem>>, vector<1x32x32xf32>
    %17 = vector.shape_cast %16 : vector<1x32x32xf32> to vector<32x32xf32>
    %cst_18 = arith.constant dense<0.000000e+00> : vector<8x32xf32>
    %18 = tpu.matmul %4, %17, %cst_18 {dimension_numbers = #tpu.dot_dimension_numbers<[1], [0], [0], [1], [0, 0, 1, 1], [], []>} : vector<8x32xf32>, vector<32x32xf32>, vector<8x32xf32> -> vector<8x32xf32>
    %c0_19 = arith.constant 0 : index
    %c0_20 = arith.constant 0 : index
    %c0_21 = arith.constant 0 : index
    %19 = vector.load %arg8[%c0_19, %c0_20, %c0_21] : memref<1x1x32xf32, #tpu.memory_space<vmem>>, vector<1x1x32xf32>
    %20 = vector.shape_cast %19 : vector<1x1x32xf32> to vector<1x32xf32>
    %21 = vector.broadcast %20 : vector<1x32xf32> to vector<8x32xf32>
    %22 = arith.addf %18, %21 : vector<8x32xf32>
    %c0_22 = arith.constant 0 : index
    %c0_23 = arith.constant 0 : index
    %c0_24 = arith.constant 0 : index
    %23 = vector.load %arg9[%c0_22, %c0_23, %c0_24] : memref<1x32x32xf32, #tpu.memory_space<vmem>>, vector<1x32x32xf32>
    %24 = vector.shape_cast %23 : vector<1x32x32xf32> to vector<32x32xf32>
    %cst_25 = arith.constant dense<0.000000e+00> : vector<8x32xf32>
    %25 = tpu.matmul %4, %24, %cst_25 {dimension_numbers = #tpu.dot_dimension_numbers<[1], [0], [0], [1], [0, 0, 1, 1], [], []>} : vector<8x32xf32>, vector<32x32xf32>, vector<8x32xf32> -> vector<8x32xf32>
    %c0_26 = arith.constant 0 : index
    %c0_27 = arith.constant 0 : index
    %c0_28 = arith.constant 0 : index
    %26 = vector.load %arg10[%c0_26, %c0_27, %c0_28] : memref<1x1x32xf32, #tpu.memory_space<vmem>>, vector<1x1x32xf32>
    %27 = vector.shape_cast %26 : vector<1x1x32xf32> to vector<1x32xf32>
    %28 = vector.broadcast %27 : vector<1x32xf32> to vector<8x32xf32>
    %29 = arith.addf %25, %28 : vector<8x32xf32>
    %c0_29 = arith.constant 0 : index
    %c0_30 = arith.constant 0 : index
    %c0_31 = arith.constant 0 : index
    %30 = vector.load %arg11[%c0_29, %c0_30, %c0_31] : memref<1x32x32xf32, #tpu.memory_space<vmem>>, vector<1x32x32xf32>
    %31 = vector.shape_cast %30 : vector<1x32x32xf32> to vector<32x32xf32>
    %cst_32 = arith.constant 0.000000e+00 : f32
    %32 = vector.broadcast %cst_32 : f32 to vector<8x32xf32>
    %33 = vector.extract_strided_slice %15 {offsets = [0, 0], sizes = [8, 16], strides = [1, 1]} : vector<8x32xf32> to vector<8x16xf32>
    %34 = vector.extract_strided_slice %22 {offsets = [0, 0], sizes = [8, 16], strides = [1, 1]} : vector<8x32xf32> to vector<8x16xf32>
    %35 = vector.extract_strided_slice %29 {offsets = [0, 0], sizes = [8, 16], strides = [1, 1]} : vector<8x32xf32> to vector<8x16xf32>
    %cst_33 = arith.constant dense<0.000000e+00> : vector<8x8xf32>
    %36 = tpu.matmul %33, %34, %cst_33 {dimension_numbers = #tpu.dot_dimension_numbers<[1], [1], [0], [0], [0, 0, 1, 0], [], []>} : vector<8x16xf32>, vector<8x16xf32>, vector<8x8xf32> -> vector<8x8xf32>
    %cst_34 = arith.constant 2.500000e-01 : f32
    %37 = vector.broadcast %cst_34 : f32 to vector<8x8xf32>
    %38 = arith.mulf %36, %37 : vector<8x8xf32>
    %39 = vector.broadcast %8 : vector<1x8xf32> to vector<8x8xf32>
    %40 = arith.addf %38, %39 : vector<8x8xf32>
    %cst_35 = arith.constant dense<0xFF800000> : vector<8xf32>
    %41 = vector.multi_reduction <maximumf>, %40, %cst_35 [1] : vector<8x8xf32> to vector<8xf32>
    %42 = vector.shape_cast %41 : vector<8xf32> to vector<8x1xf32>
    %43 = vector.broadcast %42 : vector<8x1xf32> to vector<8x8xf32>
    %44 = arith.subf %40, %43 : vector<8x8xf32>
    %45 = math.exp %44 : vector<8x8xf32>
    %cst_36 = arith.constant dense<0.000000e+00> : vector<8xf32>
    %46 = vector.multi_reduction <add>, %45, %cst_36 [1] : vector<8x8xf32> to vector<8xf32>
    %47 = vector.shape_cast %46 : vector<8xf32> to vector<8x1xf32>
    %48 = vector.broadcast %47 : vector<8x1xf32> to vector<8x8xf32>
    %49 = arith.divf %45, %48 : vector<8x8xf32>
    %cst_37 = arith.constant dense<0.000000e+00> : vector<8x16xf32>
    %50 = tpu.matmul %49, %35, %cst_37 {dimension_numbers = #tpu.dot_dimension_numbers<[1], [0], [0], [1], [0, 0, 1, 1], [], []>} : vector<8x8xf32>, vector<8x16xf32>, vector<8x16xf32> -> vector<8x16xf32>
    %51 = vector.extract_strided_slice %31 {offsets = [0, 0], sizes = [16, 32], strides = [1, 1]} : vector<32x32xf32> to vector<16x32xf32>
    %cst_38 = arith.constant dense<0.000000e+00> : vector<8x32xf32>
    %52 = tpu.matmul %50, %51, %cst_38 {dimension_numbers = #tpu.dot_dimension_numbers<[1], [0], [0], [1], [0, 0, 1, 1], [], []>} : vector<8x16xf32>, vector<16x32xf32>, vector<8x32xf32> -> vector<8x32xf32>
    %53 = arith.addf %32, %52 : vector<8x32xf32>
    %54 = vector.extract_strided_slice %15 {offsets = [0, 16], sizes = [8, 16], strides = [1, 1]} : vector<8x32xf32> to vector<8x16xf32>
    %55 = vector.extract_strided_slice %22 {offsets = [0, 16], sizes = [8, 16], strides = [1, 1]} : vector<8x32xf32> to vector<8x16xf32>
    %56 = vector.extract_strided_slice %29 {offsets = [0, 16], sizes = [8, 16], strides = [1, 1]} : vector<8x32xf32> to vector<8x16xf32>
    %cst_39 = arith.constant dense<0.000000e+00> : vector<8x8xf32>
    %57 = tpu.matmul %54, %55, %cst_39 {dimension_numbers = #tpu.dot_dimension_numbers<[1], [1], [0], [0], [0, 0, 1, 0], [], []>} : vector<8x16xf32>, vector<8x16xf32>, vector<8x8xf32> -> vector<8x8xf32>
    %cst_40 = arith.constant 2.500000e-01 : f32
    %58 = vector.broadcast %cst_40 : f32 to vector<8x8xf32>
    %59 = arith.mulf %57, %58 : vector<8x8xf32>
    %60 = vector.broadcast %8 : vector<1x8xf32> to vector<8x8xf32>
    %61 = arith.addf %59, %60 : vector<8x8xf32>
    %cst_41 = arith.constant dense<0xFF800000> : vector<8xf32>
    %62 = vector.multi_reduction <maximumf>, %61, %cst_41 [1] : vector<8x8xf32> to vector<8xf32>
    %63 = vector.shape_cast %62 : vector<8xf32> to vector<8x1xf32>
    %64 = vector.broadcast %63 : vector<8x1xf32> to vector<8x8xf32>
    %65 = arith.subf %61, %64 : vector<8x8xf32>
    %66 = math.exp %65 : vector<8x8xf32>
    %cst_42 = arith.constant dense<0.000000e+00> : vector<8xf32>
    %67 = vector.multi_reduction <add>, %66, %cst_42 [1] : vector<8x8xf32> to vector<8xf32>
    %68 = vector.shape_cast %67 : vector<8xf32> to vector<8x1xf32>
    %69 = vector.broadcast %68 : vector<8x1xf32> to vector<8x8xf32>
    %70 = arith.divf %66, %69 : vector<8x8xf32>
    %cst_43 = arith.constant dense<0.000000e+00> : vector<8x16xf32>
    %71 = tpu.matmul %70, %56, %cst_43 {dimension_numbers = #tpu.dot_dimension_numbers<[1], [0], [0], [1], [0, 0, 1, 1], [], []>} : vector<8x8xf32>, vector<8x16xf32>, vector<8x16xf32> -> vector<8x16xf32>
    %72 = vector.extract_strided_slice %31 {offsets = [16, 0], sizes = [16, 32], strides = [1, 1]} : vector<32x32xf32> to vector<16x32xf32>
    %cst_44 = arith.constant dense<0.000000e+00> : vector<8x32xf32>
    %73 = tpu.matmul %71, %72, %cst_44 {dimension_numbers = #tpu.dot_dimension_numbers<[1], [0], [0], [1], [0, 0, 1, 1], [], []>} : vector<8x16xf32>, vector<16x32xf32>, vector<8x32xf32> -> vector<8x32xf32>
    %74 = arith.addf %53, %73 : vector<8x32xf32>
    %c0_45 = arith.constant 0 : index
    %c0_46 = arith.constant 0 : index
    %c0_47 = arith.constant 0 : index
    %75 = vector.load %arg12[%c0_45, %c0_46, %c0_47] : memref<1x1x32xf32, #tpu.memory_space<vmem>>, vector<1x1x32xf32>
    %76 = vector.shape_cast %75 : vector<1x1x32xf32> to vector<1x32xf32>
    %77 = vector.broadcast %76 : vector<1x32xf32> to vector<8x32xf32>
    %78 = arith.addf %74, %77 : vector<8x32xf32>
    %79 = arith.addf %4, %78 : vector<8x32xf32>
    %cst_48 = arith.constant dense<0.000000e+00> : vector<8xf32>
    %80 = vector.multi_reduction <add>, %79, %cst_48 [1] : vector<8x32xf32> to vector<8xf32>
    %81 = vector.shape_cast %80 : vector<8xf32> to vector<8x1xf32>
    %cst_49 = arith.constant 3.200000e+01 : f32
    %82 = vector.broadcast %cst_49 : f32 to vector<8x1xf32>
    %83 = arith.divf %81, %82 : vector<8x1xf32>
    %84 = vector.broadcast %83 : vector<8x1xf32> to vector<8x32xf32>
    %85 = arith.subf %79, %84 : vector<8x32xf32>
    %86 = arith.mulf %85, %85 : vector<8x32xf32>
    %cst_50 = arith.constant dense<0.000000e+00> : vector<8xf32>
    %87 = vector.multi_reduction <add>, %86, %cst_50 [1] : vector<8x32xf32> to vector<8xf32>
    %88 = vector.shape_cast %87 : vector<8xf32> to vector<8x1xf32>
    %cst_51 = arith.constant 3.200000e+01 : f32
    %89 = vector.broadcast %cst_51 : f32 to vector<8x1xf32>
    %90 = arith.divf %88, %89 : vector<8x1xf32>
    %91 = vector.broadcast %83 : vector<8x1xf32> to vector<8x32xf32>
    %92 = arith.subf %79, %91 : vector<8x32xf32>
    %cst_52 = arith.constant 9.99999997E-7 : f32
    %93 = vector.broadcast %cst_52 : f32 to vector<8x1xf32>
    %94 = arith.addf %90, %93 : vector<8x1xf32>
    %95 = math.rsqrt %94 : vector<8x1xf32>
    %96 = vector.broadcast %95 : vector<8x1xf32> to vector<8x32xf32>
    %97 = arith.mulf %92, %96 : vector<8x32xf32>
    %c0_53 = arith.constant 0 : index
    %c0_54 = arith.constant 0 : index
    %c0_55 = arith.constant 0 : index
    %98 = vector.load %arg13[%c0_53, %c0_54, %c0_55] : memref<1x1x32xf32, #tpu.memory_space<vmem>>, vector<1x1x32xf32>
    %99 = vector.shape_cast %98 : vector<1x1x32xf32> to vector<1x32xf32>
    %100 = vector.broadcast %99 : vector<1x32xf32> to vector<8x32xf32>
    %101 = arith.mulf %97, %100 : vector<8x32xf32>
    %c0_56 = arith.constant 0 : index
    %c0_57 = arith.constant 0 : index
    %c0_58 = arith.constant 0 : index
    %102 = vector.load %arg14[%c0_56, %c0_57, %c0_58] : memref<1x1x32xf32, #tpu.memory_space<vmem>>, vector<1x1x32xf32>
    %103 = vector.shape_cast %102 : vector<1x1x32xf32> to vector<1x32xf32>
    %104 = vector.broadcast %103 : vector<1x32xf32> to vector<8x32xf32>
    %105 = arith.addf %101, %104 : vector<8x32xf32>
    %106 = vector.broadcast %6 : vector<8x1xf32> to vector<8x32xf32>
    %107 = arith.mulf %105, %106 : vector<8x32xf32>
    %c0_59 = arith.constant 0 : index
    %c0_60 = arith.constant 0 : index
    %c0_61 = arith.constant 0 : index
    %108 = vector.load %arg15[%c0_59, %c0_60, %c0_61] : memref<1x32x64xf32, #tpu.memory_space<vmem>>, vector<1x32x64xf32>
    %109 = vector.shape_cast %108 : vector<1x32x64xf32> to vector<32x64xf32>
    %cst_62 = arith.constant dense<0.000000e+00> : vector<8x64xf32>
    %110 = tpu.matmul %107, %109, %cst_62 {dimension_numbers = #tpu.dot_dimension_numbers<[1], [0], [0], [1], [0, 0, 1, 1], [], []>} : vector<8x32xf32>, vector<32x64xf32>, vector<8x64xf32> -> vector<8x64xf32>
    %c0_63 = arith.constant 0 : index
    %c0_64 = arith.constant 0 : index
    %c0_65 = arith.constant 0 : index
    %111 = vector.load %arg16[%c0_63, %c0_64, %c0_65] : memref<1x1x64xf32, #tpu.memory_space<vmem>>, vector<1x1x64xf32>
    %112 = vector.shape_cast %111 : vector<1x1x64xf32> to vector<1x64xf32>
    %113 = vector.broadcast %112 : vector<1x64xf32> to vector<8x64xf32>
    %114 = arith.addf %110, %113 : vector<8x64xf32>
    %cst_66 = arith.constant 0.000000e+00 : f32
    %115 = vector.broadcast %cst_66 : f32 to vector<8x64xf32>
    %116 = arith.maximumf %114, %115 : vector<8x64xf32>
    %c0_67 = arith.constant 0 : index
    %c0_68 = arith.constant 0 : index
    %c0_69 = arith.constant 0 : index
    %117 = vector.load %arg17[%c0_67, %c0_68, %c0_69] : memref<1x64x32xf32, #tpu.memory_space<vmem>>, vector<1x64x32xf32>
    %118 = vector.shape_cast %117 : vector<1x64x32xf32> to vector<64x32xf32>
    %cst_70 = arith.constant dense<0.000000e+00> : vector<8x32xf32>
    %119 = tpu.matmul %116, %118, %cst_70 {dimension_numbers = #tpu.dot_dimension_numbers<[1], [0], [0], [1], [0, 0, 1, 1], [], []>} : vector<8x64xf32>, vector<64x32xf32>, vector<8x32xf32> -> vector<8x32xf32>
    %c0_71 = arith.constant 0 : index
    %c0_72 = arith.constant 0 : index
    %c0_73 = arith.constant 0 : index
    %120 = vector.load %arg18[%c0_71, %c0_72, %c0_73] : memref<1x1x32xf32, #tpu.memory_space<vmem>>, vector<1x1x32xf32>
    %121 = vector.shape_cast %120 : vector<1x1x32xf32> to vector<1x32xf32>
    %122 = vector.broadcast %121 : vector<1x32xf32> to vector<8x32xf32>
    %123 = arith.addf %119, %122 : vector<8x32xf32>
    %124 = arith.addf %107, %123 : vector<8x32xf32>
    %cst_74 = arith.constant dense<0.000000e+00> : vector<8xf32>
    %125 = vector.multi_reduction <add>, %124, %cst_74 [1] : vector<8x32xf32> to vector<8xf32>
    %126 = vector.shape_cast %125 : vector<8xf32> to vector<8x1xf32>
    %cst_75 = arith.constant 3.200000e+01 : f32
    %127 = vector.broadcast %cst_75 : f32 to vector<8x1xf32>
    %128 = arith.divf %126, %127 : vector<8x1xf32>
    %129 = vector.broadcast %128 : vector<8x1xf32> to vector<8x32xf32>
    %130 = arith.subf %124, %129 : vector<8x32xf32>
    %131 = arith.mulf %130, %130 : vector<8x32xf32>
    %cst_76 = arith.constant dense<0.000000e+00> : vector<8xf32>
    %132 = vector.multi_reduction <add>, %131, %cst_76 [1] : vector<8x32xf32> to vector<8xf32>
    %133 = vector.shape_cast %132 : vector<8xf32> to vector<8x1xf32>
    %cst_77 = arith.constant 3.200000e+01 : f32
    %134 = vector.broadcast %cst_77 : f32 to vector<8x1xf32>
    %135 = arith.divf %133, %134 : vector<8x1xf32>
    %136 = vector.broadcast %128 : vector<8x1xf32> to vector<8x32xf32>
    %137 = arith.subf %124, %136 : vector<8x32xf32>
    %cst_78 = arith.constant 9.99999997E-7 : f32
    %138 = vector.broadcast %cst_78 : f32 to vector<8x1xf32>
    %139 = arith.addf %135, %138 : vector<8x1xf32>
    %140 = math.rsqrt %139 : vector<8x1xf32>
    %141 = vector.broadcast %140 : vector<8x1xf32> to vector<8x32xf32>
    %142 = arith.mulf %137, %141 : vector<8x32xf32>
    %c0_79 = arith.constant 0 : index
    %c0_80 = arith.constant 0 : index
    %c0_81 = arith.constant 0 : index
    %143 = vector.load %arg19[%c0_79, %c0_80, %c0_81] : memref<1x1x32xf32, #tpu.memory_space<vmem>>, vector<1x1x32xf32>
    %144 = vector.shape_cast %143 : vector<1x1x32xf32> to vector<1x32xf32>
    %145 = vector.broadcast %144 : vector<1x32xf32> to vector<8x32xf32>
    %146 = arith.mulf %142, %145 : vector<8x32xf32>
    %c0_82 = arith.constant 0 : index
    %c0_83 = arith.constant 0 : index
    %c0_84 = arith.constant 0 : index
    %147 = vector.load %arg20[%c0_82, %c0_83, %c0_84] : memref<1x1x32xf32, #tpu.memory_space<vmem>>, vector<1x1x32xf32>
    %148 = vector.shape_cast %147 : vector<1x1x32xf32> to vector<1x32xf32>
    %149 = vector.broadcast %148 : vector<1x32xf32> to vector<8x32xf32>
    %150 = arith.addf %146, %149 : vector<8x32xf32>
    %151 = vector.broadcast %6 : vector<8x1xf32> to vector<8x32xf32>
    %152 = arith.mulf %150, %151 : vector<8x32xf32>
    %c0_85 = arith.constant 0 : index
    %c0_86 = arith.constant 0 : index
    %c0_87 = arith.constant 0 : index
    %153 = vector.load %arg21[%c0_85, %c0_86, %c0_87] : memref<1x8x32xf32, #tpu.memory_space<vmem>>, vector<1x8x32xf32>
    %154 = vector.shape_cast %153 : vector<1x8x32xf32> to vector<8x32xf32>
    %155 = vector.shape_cast %152 : vector<8x32xf32> to vector<1x8x32xf32>
    tpu.vector_store %arg21[%c0_85, %c0_86, %c0_87], %155 {strides = array<i32>} : memref<1x8x32xf32, #tpu.memory_space<vmem>>, vector<1x8x32xf32>,
    return
  }
  func.func @transform_0(%arg0: i32, %arg1: i32) -> (i32, i32, i32) {
    %c0_i32 = arith.constant 0 : i32
    %c0_i32_0 = arith.constant 0 : i32
    %c0_i32_1 = arith.constant 0 : i32
    return %arg0, %c0_i32, %c0_i32_0 : i32, i32, i32
  }
  func.func @transform_1(%arg0: i32, %arg1: i32) -> (i32, i32, i32) {
    %c0_i32 = arith.constant 0 : i32
    %c0_i32_0 = arith.constant 0 : i32
    %c0_i32_1 = arith.constant 0 : i32
    return %arg0, %c0_i32, %c0_i32_0 : i32, i32, i32
  }
  func.func @transform_2(%arg0: i32, %arg1: i32) -> (i32, i32, i32) {
    %c0_i32 = arith.constant 0 : i32
    %c0_i32_0 = arith.constant 0 : i32
    %c0_i32_1 = arith.constant 0 : i32
    return %arg0, %c0_i32, %c0_i32_0 : i32, i32, i32
  }
  func.func @transform_3(%arg0: i32, %arg1: i32) -> (i32, i32, i32) {
    %c0_i32 = arith.constant 0 : i32
    %c0_i32_0 = arith.constant 0 : i32
    %c0_i32_1 = arith.constant 0 : i32
    return %arg1, %c0_i32, %c0_i32_0 : i32, i32, i32
  }
  func.func @transform_4(%arg0: i32, %arg1: i32) -> (i32, i32, i32) {
    %c0_i32 = arith.constant 0 : i32
    %c0_i32_0 = arith.constant 0 : i32
    %c0_i32_1 = arith.constant 0 : i32
    return %arg1, %c0_i32, %c0_i32_0 : i32, i32, i32
  }
  func.func @transform_5(%arg0: i32, %arg1: i32) -> (i32, i32, i32) {
    %c0_i32 = arith.constant 0 : i32
    %c0_i32_0 = arith.constant 0 : i32
    %c0_i32_1 = arith.constant 0 : i32
    return %arg1, %c0_i32, %c0_i32_0 : i32, i32, i32
  }
  func.func @transform_6(%arg0: i32, %arg1: i32) -> (i32, i32, i32) {
    %c0_i32 = arith.constant 0 : i32
    %c0_i32_0 = arith.constant 0 : i32
    %c0_i32_1 = arith.constant 0 : i32
    return %arg1, %c0_i32, %c0_i32_0 : i32, i32, i32
  }
  func.func @transform_7(%arg0: i32, %arg1: i32) -> (i32, i32, i32) {
    %c0_i32 = arith.constant 0 : i32
    %c0_i32_0 = arith.constant 0 : i32
    %c0_i32_1 = arith.constant 0 : i32
    return %arg1, %c0_i32, %c0_i32_0 : i32, i32, i32
  }
  func.func @transform_8(%arg0: i32, %arg1: i32) -> (i32, i32, i32) {
    %c0_i32 = arith.constant 0 : i32
    %c0_i32_0 = arith.constant 0 : i32
    %c0_i32_1 = arith.constant 0 : i32
    return %arg1, %c0_i32, %c0_i32_0 : i32, i32, i32
  }
  func.func @transform_9(%arg0: i32, %arg1: i32) -> (i32, i32, i32) {
    %c0_i32 = arith.constant 0 : i32
    %c0_i32_0 = arith.constant 0 : i32
    %c0_i32_1 = arith.constant 0 : i32
    return %arg1, %c0_i32, %c0_i32_0 : i32, i32, i32
  }
  func.func @transform_10(%arg0: i32, %arg1: i32) -> (i32, i32, i32) {
    %c0_i32 = arith.constant 0 : i32
    %c0_i32_0 = arith.constant 0 : i32
    %c0_i32_1 = arith.constant 0 : i32
    return %arg1, %c0_i32, %c0_i32_0 : i32, i32, i32
  }
  func.func @transform_11(%arg0: i32, %arg1: i32) -> (i32, i32, i32) {
    %c0_i32 = arith.constant 0 : i32
    %c0_i32_0 = arith.constant 0 : i32
    %c0_i32_1 = arith.constant 0 : i32
    return %arg1, %c0_i32, %c0_i32_0 : i32, i32, i32
  }
  func.func @transform_12(%arg0: i32, %arg1: i32) -> (i32, i32, i32) {
    %c0_i32 = arith.constant 0 : i32
    %c0_i32_0 = arith.constant 0 : i32
    %c0_i32_1 = arith.constant 0 : i32
    return %arg1, %c0_i32, %c0_i32_0 : i32, i32, i32
  }
  func.func @transform_13(%arg0: i32, %arg1: i32) -> (i32, i32, i32) {
    %c0_i32 = arith.constant 0 : i32
    %c0_i32_0 = arith.constant 0 : i32
    %c0_i32_1 = arith.constant 0 : i32
    return %arg1, %c0_i32, %c0_i32_0 : i32, i32, i32
  }
  func.func @transform_14(%arg0: i32, %arg1: i32) -> (i32, i32, i32) {
    %c0_i32 = arith.constant 0 : i32
    %c0_i32_0 = arith.constant 0 : i32
    %c0_i32_1 = arith.constant 0 : i32
    return %arg1, %c0_i32, %c0_i32_0 : i32, i32, i32
  }
  func.func @transform_15(%arg0: i32, %arg1: i32) -> (i32, i32, i32) {
    %c0_i32 = arith.constant 0 : i32
    %c0_i32_0 = arith.constant 0 : i32
    %c0_i32_1 = arith.constant 0 : i32
    return %arg1, %c0_i32, %c0_i32_0 : i32, i32, i32
  }
  func.func @transform_16(%arg0: i32, %arg1: i32) -> (i32, i32, i32) {
    %c0_i32 = arith.constant 0 : i32
    %c0_i32_0 = arith.constant 0 : i32
    %c0_i32_1 = arith.constant 0 : i32
    return %arg1, %c0_i32, %c0_i32_0 : i32, i32, i32
  }
  func.func @transform_17(%arg0: i32, %arg1: i32) -> (i32, i32, i32) {
    %c0_i32 = arith.constant 0 : i32
    %c0_i32_0 = arith.constant 0 : i32
    %c0_i32_1 = arith.constant 0 : i32
    return %arg1, %c0_i32, %c0_i32_0 : i32, i32, i32
  }
  func.func @transform_18(%arg0: i32, %arg1: i32) -> (i32, i32, i32) {
    %c0_i32 = arith.constant 0 : i32
    %c0_i32_0 = arith.constant 0 : i32
    %c0_i32_1 = arith.constant 0 : i32
    return %arg1, %c0_i32, %c0_i32_0 : i32, i32, i32
  }
  func.func @transform_19(%arg0: i32, %arg1: i32) -> (i32, i32, i32) {
    %c0_i32 = arith.constant 0 : i32
    %c0_i32_0 = arith.constant 0 : i32
    %c0_i32_1 = arith.constant 0 : i32
    return %arg0, %c0_i32, %c0_i32_0 : i32, i32, i32
  }
}

</mosaic_0001>

<llo_original>
// kernel: tpu_custom_call.1
$region0: #{tpu_custom_call.1}
  #allocation0 [shape = 'u32[]', space=smem, size = 0x4, offset = 0x4, fixed_abs, tag = 'smem constant byte address 0x4 - core index']
  #allocation1 [shape = 'u32[144,128]{1,0:T(1,128)}', space=vmem, size = 0x12000, scoped, tag = 'internal scratch']
  %s0 = inlined_call_operand.vmem [shape: f32[2,8,32], index: 0, kind: input, shape index: {}]
  %s1 = inlined_call_operand.vmem [shape: f32[2,8,1], index: 1, kind: input, shape index: {}]
  %s2 = inlined_call_operand.vmem [shape: f32[2,1,8], index: 2, kind: input, shape index: {}]
  %s3 = inlined_call_operand.vmem [shape: f32[2,32,32], index: 3, kind: input, shape index: {}]
  %s4 = inlined_call_operand.vmem [shape: f32[2,1,32], index: 4, kind: input, shape index: {}]
  %s5 = inlined_call_operand.vmem [shape: f32[2,32,32], index: 5, kind: input, shape index: {}]
  %s6 = inlined_call_operand.vmem [shape: f32[2,1,32], index: 6, kind: input, shape index: {}]
  %s7 = inlined_call_operand.vmem [shape: f32[2,32,32], index: 7, kind: input, shape index: {}]
  %s8 = inlined_call_operand.vmem [shape: f32[2,1,32], index: 8, kind: input, shape index: {}]
  %s9 = inlined_call_operand.hbm [shape: f32[2,32,32], index: 9, kind: input, shape index: {}]
  %s10 = inlined_call_operand.vmem [shape: f32[2,1,32], index: 10, kind: input, shape index: {}]
  %s11 = inlined_call_operand.vmem [shape: f32[2,1,32], index: 11, kind: input, shape index: {}]
  %s12 = inlined_call_operand.vmem [shape: f32[2,1,32], index: 12, kind: input, shape index: {}]
  %s13 = inlined_call_operand.hbm [shape: f32[2,32,64], index: 13, kind: input, shape index: {}]
  %s14 = inlined_call_operand.vmem [shape: f32[2,1,64], index: 14, kind: input, shape index: {}]
  %s15 = inlined_call_operand.vmem [shape: f32[2,64,32], index: 15, kind: input, shape index: {}]
  %s16 = inlined_call_operand.vmem [shape: f32[2,1,32], index: 16, kind: input, shape index: {}]
  %s17 = inlined_call_operand.vmem [shape: f32[2,1,32], index: 17, kind: input, shape index: {}]
  %s18 = inlined_call_operand.vmem [shape: f32[2,1,32], index: 18, kind: input, shape index: {}]
  %s19 = inlined_call_operand.hbm [shape: f32[2,8,32], index: 19, kind: output, shape index: {}]
  %s20 = sld [smem:[#allocation0]]
  $region121: #{tpu_custom_call.1} parent=0
    _
  %s22 = ssub.s32 1, %s20
  %s23 = scalar_select 0, %s22, %s20
  $region1: #{tpu_custom_call.1} parent=0
    #allocation2 [shape = 'u8[32768]{0}', space=vmem, size = 0x8000, scoped, tag = 'input window, operand 9']
    #allocation3 [shape = 's32[2]{0}', space=sflag, size = 0x8, scoped, tag = 'scoped memory for tpu_custom_call.1']
    #allocation4 [shape = 's32[2]{0}', space=sflag, size = 0x8, scoped, tag = 'scoped memory for tpu_custom_call.1']
    #allocation5 [shape = 'u8[32768]{0}', space=vmem, size = 0x8000, scoped, tag = 'input window, operand 13']
    #allocation6 [shape = 's32[2]{0}', space=sflag, size = 0x8, scoped, tag = 'scoped memory for tpu_custom_call.1']
    #allocation7 [shape = 'u8[8192]{0}', space=vmem, size = 0x2000, scoped, tag = 'output window, operand 0']
    %24 = vsyncpa [#allocation3], 0
    %s25 = scalar_lea.sflag [#allocation3], 1
    %26 = vsyncpa %s25, 0
    %27 = vsyncpa [#allocation6], 0
    %s28 = scalar_lea.sflag [#allocation6], 1
    %29 = vsyncpa %s28, 0
    %30 = vsyncpa [#allocation4], 0
    %s31 = scalar_lea.sflag [#allocation4], 1
    %32 = vsyncpa %s31, 0
    loop: start=0, step=1, limit=6
    $region2: #{tpu_custom_call.1} parent=1 // loop_pre_header
      _
    $region3: #{tpu_custom_call.1} parent=1 // loop_header
      %s34 = sphi 0, %s38
      %p35 = scmp.ge.s32.totalorder %s34, 6
      %s41 = sphi 0, %s53
      %s42 = sphi 0, %s49
      %s43 = sphi 0, %s41
      %s44 = sphi 0, %s42
      %s45 = sphi 0, %s43
      %s46 = sphi 0, %s44
      %s56 = sphi 0, %s58
      %s59 = sphi 0, %s56
      %s60 = sphi 0, %s59
      %s76 = sphi 0, %s60
      %s82 = sphi 0, %s84
      %s85 = sphi 0, %s82
      %s86 = sphi 0, %s85
      %s102 = sphi 0, %s86
      %s108 = sphi 0, %s110
      %s111 = sphi 0, %s108
      %s112 = sphi 0, %s111
      %s128 = sphi 0, %s112
      %s134 = sphi 0, %s136
      %s137 = sphi 0, %s134
      %s138 = sphi 0, %s137
      %s154 = sphi 0, %s138
      %s160 = sphi 0, %s162
      %s163 = sphi 0, %s160
      %s164 = sphi 0, %s163
      %s180 = sphi 0, %s164
      %s186 = sphi 0, %s188
      %s189 = sphi 0, %s186
      %s190 = sphi 0, %s189
      %s206 = sphi 0, %s190
      %s212 = sphi 0, %s214
      %s215 = sphi 0, %s212
      %s216 = sphi 0, %s215
      %s232 = sphi 0, %s216
      %s238 = sphi 0, %s240
      %s241 = sphi 0, %s238
      %s242 = sphi 0, %s241
      %s258 = sphi 0, %s242
      %s264 = sphi 0, %s266
      %s267 = sphi 0, %s264
      %s268 = sphi 0, %s267
      %s284 = sphi 0, %s268
      %s290 = sphi 0, %s292
      %s293 = sphi 0, %s290
      %s294 = sphi 0, %s293
      %s310 = sphi 0, %s294
      %s316 = sphi 0, %s318
      %s319 = sphi 0, %s316
      %s320 = sphi 0, %s319
      %s336 = sphi 0, %s320
      %s342 = sphi 0, %s344
      %s345 = sphi 0, %s342
      %s346 = sphi 0, %s345
      %s362 = sphi 0, %s346
      %s368 = sphi 0, %s370
      %s371 = sphi 0, %s368
      %s372 = sphi 0, %s371
      %s388 = sphi 0, %s372
      %s394 = sphi 0, %s396
      %s397 = sphi 0, %s394
      %s398 = sphi 0, %s397
      %s414 = sphi 0, %s398
      %s420 = sphi 0, %s422
      %s423 = sphi 0, %s420
      %s424 = sphi 0, %s423
      %s440 = sphi 0, %s424
      %s446 = sphi 0, %s448
      %s449 = sphi 0, %s446
      %s450 = sphi 0, %s449
      %s466 = sphi 0, %s450
      %s472 = sphi 0, %s474
      %s475 = sphi 0, %s472
      %s476 = sphi 0, %s475
      %s492 = sphi 0, %s476
      %s498 = sphi 0, %s500
      %s501 = sphi 0, %s498
      %s502 = sphi 0, %s501
      %s518 = sphi 0, %s502
      %s524 = sphi 0, %s526
      %s527 = sphi 0, %s524
      %s528 = sphi 0, %s527
      %s544 = sphi 0, %s528
      %s550 = sphi 0, %s552
      %s553 = sphi 0, %s550
      %s554 = sphi 0, %s553
      %s570 = sphi 0, %s554
    $region4: #{tpu_custom_call.1} parent=1 // loop_header_branch
      %37 = sbr.rel (%p35) target = $region8
    $region5: #{tpu_custom_call.1} parent=1 // loop_body
      %s39 = ssub.s32 %s34, 1
      %s40 = ssub.s32 %s34, 2
      %s47 = sadd.s32 1, %s42
      %p48 = scmp.ge.s32.totalorder %s47, 2
      %s49 = scalar_select %p48, 0, %s47
      %s50 = sadd.s32 1, %s41
      %s51 = scalar_select %p48, %s50, %s41
      %p52 = scmp.ge.s32.totalorder %s51, 2
      %s53 = scalar_select %p52, 0, %s51
      %s54 = ssub.s32 %s41, %s53
      %p55 = scmp.eq.s32.totalorder %s54, 0
      %s57 = sadd.s32 %s56, 1
      %s58 = scalar_select %p55, %s56, %s57
      %p61 = pneg %p55
      %p62 = scmp.eq.s32.totalorder %s34, 3
      %p63 = por %p61, %p62
      %p64 = scmp.ne.s32.totalorder %s56, %s59
      %p65 = scmp.eq.s32.totalorder %s34, 0
      %p66 = por %p64, %p65
      %p67 = scmp.ne.s32.totalorder %s56, %s59
      %p68 = scmp.eq.s32.totalorder %s39, 3
      %p69 = por %p67, %p68
      %p70 = scmp.ne.s32.totalorder %s59, %s60
      %p71 = scmp.eq.s32.totalorder %s39, 0
      %p72 = por %p70, %p71
      %p73 = scmp.ne.s32.totalorder %s59, %s60
      %p74 = scmp.eq.s32.totalorder %s40, 3
      %p75 = por %p73, %p74
      %p77 = scmp.ne.s32.totalorder %s60, %s76
      %p78 = scmp.eq.s32.totalorder %s40, 0
      %p79 = por %p77, %p78
      %s80 = ssub.s32 %s41, %s53
      %p81 = scmp.eq.s32.totalorder %s80, 0
      %s83 = sadd.s32 %s82, 1
      %s84 = scalar_select %p81, %s82, %s83
      %p87 = pneg %p81
      %p88 = scmp.eq.s32.totalorder %s34, 3
      %p89 = por %p87, %p88
      %p90 = scmp.ne.s32.totalorder %s82, %s85
      %p91 = scmp.eq.s32.totalorder %s34, 0
      %p92 = por %p90, %p91
      %p93 = scmp.ne.s32.totalorder %s82, %s85
      %p94 = scmp.eq.s32.totalorder %s39, 3
      %p95 = por %p93, %p94
      %p96 = scmp.ne.s32.totalorder %s85, %s86
      %p97 = scmp.eq.s32.totalorder %s39, 0
      %p98 = por %p96, %p97
      %p99 = scmp.ne.s32.totalorder %s85, %s86
      %p100 = scmp.eq.s32.totalorder %s40, 3
      %p101 = por %p99, %p100
      %p103 = scmp.ne.s32.totalorder %s86, %s102
      %p104 = scmp.eq.s32.totalorder %s40, 0
      %p105 = por %p103, %p104
      %s106 = ssub.s32 %s41, %s53
      %p107 = scmp.eq.s32.totalorder %s106, 0
      %s109 = sadd.s32 %s108, 1
      %s110 = scalar_select %p107, %s108, %s109
      %p113 = pneg %p107
      %p114 = scmp.eq.s32.totalorder %s34, 3
      %p115 = por %p113, %p114
      %p116 = scmp.ne.s32.totalorder %s108, %s111
      %p117 = scmp.eq.s32.totalorder %s34, 0
      %p118 = por %p116, %p117
      %p119 = scmp.ne.s32.totalorder %s108, %s111
      %p120 = scmp.eq.s32.totalorder %s39, 3
      %p121 = por %p119, %p120
      %p122 = scmp.ne.s32.totalorder %s111, %s112
      %p123 = scmp.eq.s32.totalorder %s39, 0
      %p124 = por %p122, %p123
      %p125 = scmp.ne.s32.totalorder %s111, %s112
      %p126 = scmp.eq.s32.totalorder %s40, 3
      %p127 = por %p125, %p126
      %p129 = scmp.ne.s32.totalorder %s112, %s128
      %p130 = scmp.eq.s32.totalorder %s40, 0
      %p131 = por %p129, %p130
      %s132 = ssub.s32 %s42, %s49
      %p133 = scmp.eq.s32.totalorder %s132, 0
      %s135 = sadd.s32 %s134, 1
      %s136 = scalar_select %p133, %s134, %s135
      %p139 = pneg %p133
      %p140 = scmp.eq.s32.totalorder %s34, 3
      %p141 = por %p139, %p140
      %p142 = scmp.ne.s32.totalorder %s134, %s137
      %p143 = scmp.eq.s32.totalorder %s34, 0
      %p144 = por %p142, %p143
      %p145 = scmp.ne.s32.totalorder %s134, %s137
      %p146 = scmp.eq.s32.totalorder %s39, 3
      %p147 = por %p145, %p146
      %p148 = scmp.ne.s32.totalorder %s137, %s138
      %p149 = scmp.eq.s32.totalorder %s39, 0
      %p150 = por %p148, %p149
      %p151 = scmp.ne.s32.totalorder %s137, %s138
      %p152 = scmp.eq.s32.totalorder %s40, 3
      %p153 = por %p151, %p152
      %p155 = scmp.ne.s32.totalorder %s138, %s154
      %p156 = scmp.eq.s32.totalorder %s40, 0
      %p157 = por %p155, %p156
      %s158 = ssub.s32 %s42, %s49
      %p159 = scmp.eq.s32.totalorder %s158, 0
      %s161 = sadd.s32 %s160, 1
      %s162 = scalar_select %p159, %s160, %s161
      %p165 = pneg %p159
      %p166 = scmp.eq.s32.totalorder %s34, 3
      %p167 = por %p165, %p166
      %p168 = scmp.ne.s32.totalorder %s160, %s163
      %p169 = scmp.eq.s32.totalorder %s34, 0
      %p170 = por %p168, %p169
      %p171 = scmp.ne.s32.totalorder %s160, %s163
      %p172 = scmp.eq.s32.totalorder %s39, 3
      %p173 = por %p171, %p172
      %p174 = scmp.ne.s32.totalorder %s163, %s164
      %p175 = scmp.eq.s32.totalorder %s39, 0
      %p176 = por %p174, %p175
      %p177 = scmp.ne.s32.totalorder %s163, %s164
      %p178 = scmp.eq.s32.totalorder %s40, 3
      %p179 = por %p177, %p178
      %p181 = scmp.ne.s32.totalorder %s164, %s180
      %p182 = scmp.eq.s32.totalorder %s40, 0
      %p183 = por %p181, %p182
      %s184 = ssub.s32 %s42, %s49
      %p185 = scmp.eq.s32.totalorder %s184, 0
      %s187 = sadd.s32 %s186, 1
      %s188 = scalar_select %p185, %s186, %s187
      %p191 = pneg %p185
      %p192 = scmp.eq.s32.totalorder %s34, 3
      %p193 = por %p191, %p192
      %p194 = scmp.ne.s32.totalorder %s186, %s189
      %p195 = scmp.eq.s32.totalorder %s34, 0
      %p196 = por %p194, %p195
      %p197 = scmp.ne.s32.totalorder %s186, %s189
      %p198 = scmp.eq.s32.totalorder %s39, 3
      %p199 = por %p197, %p198
      %p200 = scmp.ne.s32.totalorder %s189, %s190
      %p201 = scmp.eq.s32.totalorder %s39, 0
      %p202 = por %p200, %p201
      %p203 = scmp.ne.s32.totalorder %s189, %s190
      %p204 = scmp.eq.s32.totalorder %s40, 3
      %p205 = por %p203, %p204
      %p207 = scmp.ne.s32.totalorder %s190, %s206
      %p208 = scmp.eq.s32.totalorder %s40, 0
      %p209 = por %p207, %p208
      %s210 = ssub.s32 %s42, %s49
      %p211 = scmp.eq.s32.totalorder %s210, 0
      %s213 = sadd.s32 %s212, 1
      %s214 = scalar_select %p211, %s212, %s213
      %p217 = pneg %p211
      %p218 = scmp.eq.s32.totalorder %s34, 3
      %p219 = por %p217, %p218
      %p220 = scmp.ne.s32.totalorder %s212, %s215
      %p221 = scmp.eq.s32.totalorder %s34, 0
      %p222 = por %p220, %p221
      %p223 = scmp.ne.s32.totalorder %s212, %s215
      %p224 = scmp.eq.s32.totalorder %s39, 3
      %p225 = por %p223, %p224
      %p226 = scmp.ne.s32.totalorder %s215, %s216
      %p227 = scmp.eq.s32.totalorder %s39, 0
      %p228 = por %p226, %p227
      %p229 = scmp.ne.s32.totalorder %s215, %s216
      %p230 = scmp.eq.s32.totalorder %s40, 3
      %p231 = por %p229, %p230
      %p233 = scmp.ne.s32.totalorder %s216, %s232
      %p234 = scmp.eq.s32.totalorder %s40, 0
      %p235 = por %p233, %p234
      %s236 = ssub.s32 %s42, %s49
      %p237 = scmp.eq.s32.totalorder %s236, 0
      %s239 = sadd.s32 %s238, 1
      %s240 = scalar_select %p237, %s238, %s239
      %p243 = pneg %p237
      %p244 = scmp.eq.s32.totalorder %s34, 3
      %p245 = por %p243, %p244
      %p246 = scmp.ne.s32.totalorder %s238, %s241
      %p247 = scmp.eq.s32.totalorder %s34, 0
      %p248 = por %p246, %p247
      %p249 = scmp.ne.s32.totalorder %s238, %s241
      %p250 = scmp.eq.s32.totalorder %s39, 3
      %p251 = por %p249, %p250
      %p252 = scmp.ne.s32.totalorder %s241, %s242
      %p253 = scmp.eq.s32.totalorder %s39, 0
      %p254 = por %p252, %p253
      %p255 = scmp.ne.s32.totalorder %s241, %s242
      %p256 = scmp.eq.s32.totalorder %s40, 3
      %p257 = por %p255, %p256
      %p259 = scmp.ne.s32.totalorder %s242, %s258
      %p260 = scmp.eq.s32.totalorder %s40, 0
      %p261 = por %p259, %p260
      %s262 = ssub.s32 %s42, %s49
      %p263 = scmp.eq.s32.totalorder %s262, 0
      %s265 = sadd.s32 %s264, 1
      %s266 = scalar_select %p263, %s264, %s265
      %p269 = pneg %p263
      %p270 = scmp.eq.s32.totalorder %s34, 3
      %p271 = por %p269, %p270
      %p272 = scmp.ne.s32.totalorder %s264, %s267
      %p273 = scmp.eq.s32.totalorder %s34, 0
      %p274 = por %p272, %p273
      %p275 = scmp.ne.s32.totalorder %s264, %s267
      %p276 = scmp.eq.s32.totalorder %s39, 3
      %p277 = por %p275, %p276
      %p278 = scmp.ne.s32.totalorder %s267, %s268
      %p279 = scmp.eq.s32.totalorder %s39, 0
      %p280 = por %p278, %p279
      %p281 = scmp.ne.s32.totalorder %s267, %s268
      %p282 = scmp.eq.s32.totalorder %s40, 3
      %p283 = por %p281, %p282
      %p285 = scmp.ne.s32.totalorder %s268, %s284
      %p286 = scmp.eq.s32.totalorder %s40, 0
      %p287 = por %p285, %p286
      %s288 = ssub.s32 %s42, %s49
      %p289 = scmp.eq.s32.totalorder %s288, 0
      %s291 = sadd.s32 %s290, 1
      %s292 = scalar_select %p289, %s290, %s291
      %p295 = pneg %p289
      %p296 = scmp.eq.s32.totalorder %s34, 3
      %p297 = por %p295, %p296
      %p298 = scmp.ne.s32.totalorder %s290, %s293
      %p299 = scmp.eq.s32.totalorder %s34, 0
      %p300 = por %p298, %p299
      %p301 = scmp.ne.s32.totalorder %s290, %s293
      %p302 = scmp.eq.s32.totalorder %s39, 3
      %p303 = por %p301, %p302
      %p304 = scmp.ne.s32.totalorder %s293, %s294
      %p305 = scmp.eq.s32.totalorder %s39, 0
      %p306 = por %p304, %p305
      %p307 = scmp.ne.s32.totalorder %s293, %s294
      %p308 = scmp.eq.s32.totalorder %s40, 3
      %p309 = por %p307, %p308
      %p311 = scmp.ne.s32.totalorder %s294, %s310
      %p312 = scmp.eq.s32.totalorder %s40, 0
      %p313 = por %p311, %p312
      %s314 = ssub.s32 %s42, %s49
      %p315 = scmp.eq.s32.totalorder %s314, 0
      %s317 = sadd.s32 %s316, 1
      %s318 = scalar_select %p315, %s316, %s317
      %p321 = pneg %p315
      %p322 = scmp.eq.s32.totalorder %s34, 3
      %p323 = por %p321, %p322
      %p324 = scmp.ne.s32.totalorder %s316, %s319
      %p325 = scmp.eq.s32.totalorder %s34, 0
      %p326 = por %p324, %p325
      %p327 = scmp.ne.s32.totalorder %s316, %s319
      %p328 = scmp.eq.s32.totalorder %s39, 3
      %p329 = por %p327, %p328
      %p330 = scmp.ne.s32.totalorder %s319, %s320
      %p331 = scmp.eq.s32.totalorder %s39, 0
      %p332 = por %p330, %p331
      %p333 = scmp.ne.s32.totalorder %s319, %s320
      %p334 = scmp.eq.s32.totalorder %s40, 3
      %p335 = por %p333, %p334
      %p337 = scmp.ne.s32.totalorder %s320, %s336
      %p338 = scmp.eq.s32.totalorder %s40, 0
      %p339 = por %p337, %p338
      %s340 = ssub.s32 %s42, %s49
      %p341 = scmp.eq.s32.totalorder %s340, 0
      %s343 = sadd.s32 %s342, 1
      %s344 = scalar_select %p341, %s342, %s343
      %p347 = pneg %p341
      %p348 = scmp.eq.s32.totalorder %s34, 3
      %p349 = por %p347, %p348
      %p350 = scmp.ne.s32.totalorder %s342, %s345
      %p351 = scmp.eq.s32.totalorder %s34, 0
      %p352 = por %p350, %p351
      %p353 = scmp.ne.s32.totalorder %s342, %s345
      %p354 = scmp.eq.s32.totalorder %s39, 3
      %p355 = por %p353, %p354
      %p356 = scmp.ne.s32.totalorder %s345, %s346
      %p357 = scmp.eq.s32.totalorder %s39, 0
      %p358 = por %p356, %p357
      %p359 = scmp.ne.s32.totalorder %s345, %s346
      %p360 = scmp.eq.s32.totalorder %s40, 3
      %p361 = por %p359, %p360
      %p363 = scmp.ne.s32.totalorder %s346, %s362
      %p364 = scmp.eq.s32.totalorder %s40, 0
      %p365 = por %p363, %p364
      %s366 = ssub.s32 %s42, %s49
      %p367 = scmp.eq.s32.totalorder %s366, 0
      %s369 = sadd.s32 %s368, 1
      %s370 = scalar_select %p367, %s368, %s369
      %p373 = pneg %p367
      %p374 = scmp.eq.s32.totalorder %s34, 3
      %p375 = por %p373, %p374
      %p376 = scmp.ne.s32.totalorder %s368, %s371
      %p377 = scmp.eq.s32.totalorder %s34, 0
      %p378 = por %p376, %p377
      %p379 = scmp.ne.s32.totalorder %s368, %s371
      %p380 = scmp.eq.s32.totalorder %s39, 3
      %p381 = por %p379, %p380
      %p382 = scmp.ne.s32.totalorder %s371, %s372
      %p383 = scmp.eq.s32.totalorder %s39, 0
      %p384 = por %p382, %p383
      %p385 = scmp.ne.s32.totalorder %s371, %s372
      %p386 = scmp.eq.s32.totalorder %s40, 3
      %p387 = por %p385, %p386
      %p389 = scmp.ne.s32.totalorder %s372, %s388
      %p390 = scmp.eq.s32.totalorder %s40, 0
      %p391 = por %p389, %p390
      %s392 = ssub.s32 %s42, %s49
      %p393 = scmp.eq.s32.totalorder %s392, 0
      %s395 = sadd.s32 %s394, 1
      %s396 = scalar_select %p393, %s394, %s395
      %p399 = pneg %p393
      %p400 = scmp.eq.s32.totalorder %s34, 3
      %p401 = por %p399, %p400
      %p402 = scmp.ne.s32.totalorder %s394, %s397
      %p403 = scmp.eq.s32.totalorder %s34, 0
      %p404 = por %p402, %p403
      %p405 = scmp.ne.s32.totalorder %s394, %s397
      %p406 = scmp.eq.s32.totalorder %s39, 3
      %p407 = por %p405, %p406
      %p408 = scmp.ne.s32.totalorder %s397, %s398
      %p409 = scmp.eq.s32.totalorder %s39, 0
      %p410 = por %p408, %p409
      %p411 = scmp.ne.s32.totalorder %s397, %s398
      %p412 = scmp.eq.s32.totalorder %s40, 3
      %p413 = por %p411, %p412
      %p415 = scmp.ne.s32.totalorder %s398, %s414
      %p416 = scmp.eq.s32.totalorder %s40, 0
      %p417 = por %p415, %p416
      %s418 = ssub.s32 %s42, %s49
      %p419 = scmp.eq.s32.totalorder %s418, 0
      %s421 = sadd.s32 %s420, 1
      %s422 = scalar_select %p419, %s420, %s421
      %p425 = pneg %p419
      %p426 = scmp.eq.s32.totalorder %s34, 3
      %p427 = por %p425, %p426
      %p428 = scmp.ne.s32.totalorder %s420, %s423
      %p429 = scmp.eq.s32.totalorder %s34, 0
      %p430 = por %p428, %p429
      %p431 = scmp.ne.s32.totalorder %s420, %s423
      %p432 = scmp.eq.s32.totalorder %s39, 3
      %p433 = por %p431, %p432
      %p434 = scmp.ne.s32.totalorder %s423, %s424
      %p435 = scmp.eq.s32.totalorder %s39, 0
      %p436 = por %p434, %p435
      %p437 = scmp.ne.s32.totalorder %s423, %s424
      %p438 = scmp.eq.s32.totalorder %s40, 3
      %p439 = por %p437, %p438
      %p441 = scmp.ne.s32.totalorder %s424, %s440
      %p442 = scmp.eq.s32.totalorder %s40, 0
      %p443 = por %p441, %p442
      %s444 = ssub.s32 %s42, %s49
      %p445 = scmp.eq.s32.totalorder %s444, 0
      %s447 = sadd.s32 %s446, 1
      %s448 = scalar_select %p445, %s446, %s447
      %p451 = pneg %p445
      %p452 = scmp.eq.s32.totalorder %s34, 3
      %p453 = por %p451, %p452
      %p454 = scmp.ne.s32.totalorder %s446, %s449
      %p455 = scmp.eq.s32.totalorder %s34, 0
      %p456 = por %p454, %p455
      %p457 = scmp.ne.s32.totalorder %s446, %s449
      %p458 = scmp.eq.s32.totalorder %s39, 3
      %p459 = por %p457, %p458
      %p460 = scmp.ne.s32.totalorder %s449, %s450
      %p461 = scmp.eq.s32.totalorder %s39, 0
      %p462 = por %p460, %p461
      %p463 = scmp.ne.s32.totalorder %s449, %s450
      %p464 = scmp.eq.s32.totalorder %s40, 3
      %p465 = por %p463, %p464
      %p467 = scmp.ne.s32.totalorder %s450, %s466
      %p468 = scmp.eq.s32.totalorder %s40, 0
      %p469 = por %p467, %p468
      %s470 = ssub.s32 %s42, %s49
      %p471 = scmp.eq.s32.totalorder %s470, 0
      %s473 = sadd.s32 %s472, 1
      %s474 = scalar_select %p471, %s472, %s473
      %p477 = pneg %p471
      %p478 = scmp.eq.s32.totalorder %s34, 3
      %p479 = por %p477, %p478
      %p480 = scmp.ne.s32.totalorder %s472, %s475
      %p481 = scmp.eq.s32.totalorder %s34, 0
      %p482 = por %p480, %p481
      %p483 = scmp.ne.s32.totalorder %s472, %s475
      %p484 = scmp.eq.s32.totalorder %s39, 3
      %p485 = por %p483, %p484
      %p486 = scmp.ne.s32.totalorder %s475, %s476
      %p487 = scmp.eq.s32.totalorder %s39, 0
      %p488 = por %p486, %p487
      %p489 = scmp.ne.s32.totalorder %s475, %s476
      %p490 = scmp.eq.s32.totalorder %s40, 3
      %p491 = por %p489, %p490
      %p493 = scmp.ne.s32.totalorder %s476, %s492
      %p494 = scmp.eq.s32.totalorder %s40, 0
      %p495 = por %p493, %p494
      %s496 = ssub.s32 %s42, %s49
      %p497 = scmp.eq.s32.totalorder %s496, 0
      %s499 = sadd.s32 %s498, 1
      %s500 = scalar_select %p497, %s498, %s499
      %p503 = pneg %p497
      %p504 = scmp.eq.s32.totalorder %s34, 3
      %p505 = por %p503, %p504
      %p506 = scmp.ne.s32.totalorder %s498, %s501
      %p507 = scmp.eq.s32.totalorder %s34, 0
      %p508 = por %p506, %p507
      %p509 = scmp.ne.s32.totalorder %s498, %s501
      %p510 = scmp.eq.s32.totalorder %s39, 3
      %p511 = por %p509, %p510
      %p512 = scmp.ne.s32.totalorder %s501, %s502
      %p513 = scmp.eq.s32.totalorder %s39, 0
      %p514 = por %p512, %p513
      %p515 = scmp.ne.s32.totalorder %s501, %s502
      %p516 = scmp.eq.s32.totalorder %s40, 3
      %p517 = por %p515, %p516
      %p519 = scmp.ne.s32.totalorder %s502, %s518
      %p520 = scmp.eq.s32.totalorder %s40, 0
      %p521 = por %p519, %p520
      %s522 = ssub.s32 %s42, %s49
      %p523 = scmp.eq.s32.totalorder %s522, 0
      %s525 = sadd.s32 %s524, 1
      %s526 = scalar_select %p523, %s524, %s525
      %p529 = pneg %p523
      %p530 = scmp.eq.s32.totalorder %s34, 3
      %p531 = por %p529, %p530
      %p532 = scmp.ne.s32.totalorder %s524, %s527
      %p533 = scmp.eq.s32.totalorder %s34, 0
      %p534 = por %p532, %p533
      %p535 = scmp.ne.s32.totalorder %s524, %s527
      %p536 = scmp.eq.s32.totalorder %s39, 3
      %p537 = por %p535, %p536
      %p538 = scmp.ne.s32.totalorder %s527, %s528
      %p539 = scmp.eq.s32.totalorder %s39, 0
      %p540 = por %p538, %p539
      %p541 = scmp.ne.s32.totalorder %s527, %s528
      %p542 = scmp.eq.s32.totalorder %s40, 3
      %p543 = por %p541, %p542
      %p545 = scmp.ne.s32.totalorder %s528, %s544
      %p546 = scmp.eq.s32.totalorder %s40, 0
      %p547 = por %p545, %p546
      %s548 = ssub.s32 %s41, %s53
      %p549 = scmp.eq.s32.totalorder %s548, 0
      %s551 = sadd.s32 %s550, 1
      %s552 = scalar_select %p549, %s550, %s551
      %p555 = pneg %p549
      %p556 = scmp.eq.s32.totalorder %s34, 3
      %p557 = por %p555, %p556
      %p558 = scmp.ne.s32.totalorder %s550, %s553
      %p559 = scmp.eq.s32.totalorder %s34, 0
      %p560 = por %p558, %p559
      %p561 = scmp.ne.s32.totalorder %s550, %s553
      %p562 = scmp.eq.s32.totalorder %s39, 3
      %p563 = por %p561, %p562
      %p564 = scmp.ne.s32.totalorder %s553, %s554
      %p565 = scmp.eq.s32.totalorder %s39, 0
      %p566 = por %p564, %p565
      %p567 = scmp.ne.s32.totalorder %s553, %s554
      %p568 = scmp.eq.s32.totalorder %s40, 3
      %p569 = por %p567, %p568
      %p571 = scmp.ne.s32.totalorder %s554, %s570
      %p572 = scmp.eq.s32.totalorder %s40, 0
      %p573 = por %p571, %p572
      %p574 = scmp.le.s32.totalorder 1, %s34
      %p575 = scmp.lt.s32.totalorder %s34, 5
      %p576 = pnand %p574, %p575
      %p577 = pneg %p576
      // Predicated region
      $region9: #{tpu_custom_call.1} parent=5 // pred_check
        _
      $region10: #{tpu_custom_call.1} parent=5 // pred_check_branch
        %579 = sbr.rel (%p576) target = $region12
      $region11: #{tpu_custom_call.1} parent=5 // pred_region
        %s580 = ssub.s32 %s34, 1
      $region12: #{tpu_custom_call.1} parent=5 // pred_fallthru
        _
      %p581 = scmp.lt.s32.totalorder %s34, 4
      // Predicated region
      $region13: #{tpu_custom_call.1} parent=5 // pred_check
        %p582 = pneg %p581
      $region14: #{tpu_custom_call.1} parent=5 // pred_check_branch
        %584 = sbr.rel (%p582) target = $region16
      $region15: #{tpu_custom_call.1} parent=5 // pred_region
        // Predicated region
        $region17: #{tpu_custom_call.1} parent=15 // pred_check
          %p585 = pneg %p66
        $region18: #{tpu_custom_call.1} parent=15 // pred_check_branch
          %587 = sbr.rel (%p585) target = $region20
        $region19: #{tpu_custom_call.1} parent=15 // pred_region
          %p588 = scmp.lt.s32.totalorder %s41, 1
          %s589 = scalar_select %p588, %s41, 1
          %s590 = smul.addr %s589, 8
          %s591 = scalar_lea.vmem %s0, %s590
        $region20: #{tpu_custom_call.1} parent=15 // pred_fallthru
          _
        // Predicated region
        $region21: #{tpu_custom_call.1} parent=15 // pred_check
          %p592 = pneg %p92
        $region22: #{tpu_custom_call.1} parent=15 // pred_check_branch
          %594 = sbr.rel (%p592) target = $region24
        $region23: #{tpu_custom_call.1} parent=15 // pred_region
          %p595 = scmp.lt.s32.totalorder %s41, 1
          %s596 = scalar_select %p595, %s41, 1
          %s597 = smul.addr %s596, 8
          %s598 = scalar_lea.vmem %s1, %s597
        $region24: #{tpu_custom_call.1} parent=15 // pred_fallthru
          _
        // Predicated region
        $region25: #{tpu_custom_call.1} parent=15 // pred_check
          %p599 = pneg %p118
        $region26: #{tpu_custom_call.1} parent=15 // pred_check_branch
          %601 = sbr.rel (%p599) target = $region28
        $region27: #{tpu_custom_call.1} parent=15 // pred_region
          %p602 = scmp.lt.s32.totalorder %s41, 1
          %s603 = scalar_select %p602, %s41, 1
          %s604 = scalar_lea.vmem %s2, %s603
        $region28: #{tpu_custom_call.1} parent=15 // pred_fallthru
          _
        // Predicated region
        $region29: #{tpu_custom_call.1} parent=15 // pred_check
          %p605 = pneg %p144
        $region30: #{tpu_custom_call.1} parent=15 // pred_check_branch
          %607 = sbr.rel (%p605) target = $region32
        $region31: #{tpu_custom_call.1} parent=15 // pred_region
          %p608 = scmp.lt.s32.totalorder %s42, 1
          %s609 = scalar_select %p608, %s42, 1
          %s610 = smul.addr %s609, 4
          %s611 = smul.addr %s610, 8
          %s612 = scalar_lea.vmem %s3, %s611
        $region32: #{tpu_custom_call.1} parent=15 // pred_fallthru
          _
        // Predicated region
        $region33: #{tpu_custom_call.1} parent=15 // pred_check
          %p613 = pneg %p170
        $region34: #{tpu_custom_call.1} parent=15 // pred_check_branch
          %615 = sbr.rel (%p613) target = $region36
        $region35: #{tpu_custom_call.1} parent=15 // pred_region
          %p616 = scmp.lt.s32.totalorder %s42, 1
          %s617 = scalar_select %p616, %s42, 1
          %s618 = scalar_lea.vmem %s4, %s617
        $region36: #{tpu_custom_call.1} parent=15 // pred_fallthru
          _
        // Predicated region
        $region37: #{tpu_custom_call.1} parent=15 // pred_check
          %p619 = pneg %p196
        $region38: #{tpu_custom_call.1} parent=15 // pred_check_branch
          %621 = sbr.rel (%p619) target = $region40
        $region39: #{tpu_custom_call.1} parent=15 // pred_region
          %p622 = scmp.lt.s32.totalorder %s42, 1
          %s623 = scalar_select %p622, %s42, 1
          %s624 = smul.addr %s623, 4
          %s625 = smul.addr %s624, 8
          %s626 = scalar_lea.vmem %s5, %s625
        $region40: #{tpu_custom_call.1} parent=15 // pred_fallthru
          _
        // Predicated region
        $region41: #{tpu_custom_call.1} parent=15 // pred_check
          %p627 = pneg %p222
        $region42: #{tpu_custom_call.1} parent=15 // pred_check_branch
          %629 = sbr.rel (%p627) target = $region44
        $region43: #{tpu_custom_call.1} parent=15 // pred_region
          %p630 = scmp.lt.s32.totalorder %s42, 1
          %s631 = scalar_select %p630, %s42, 1
          %s632 = scalar_lea.vmem %s6, %s631
        $region44: #{tpu_custom_call.1} parent=15 // pred_fallthru
          _
        // Predicated region
        $region45: #{tpu_custom_call.1} parent=15 // pred_check
          %p633 = pneg %p248
        $region46: #{tpu_custom_call.1} parent=15 // pred_check_branch
          %635 = sbr.rel (%p633) target = $region48
        $region47: #{tpu_custom_call.1} parent=15 // pred_region
          %p636 = scmp.lt.s32.totalorder %s42, 1
          %s637 = scalar_select %p636, %s42, 1
          %s638 = smul.addr %s637, 4
          %s639 = smul.addr %s638, 8
          %s640 = scalar_lea.vmem %s7, %s639
        $region48: #{tpu_custom_call.1} parent=15 // pred_fallthru
          _
        // Predicated region
        $region49: #{tpu_custom_call.1} parent=15 // pred_check
          %p641 = pneg %p274
        $region50: #{tpu_custom_call.1} parent=15 // pred_check_branch
          %643 = sbr.rel (%p641) target = $region52
        $region51: #{tpu_custom_call.1} parent=15 // pred_region
          %p644 = scmp.lt.s32.totalorder %s42, 1
          %s645 = scalar_select %p644, %s42, 1
          %s646 = scalar_lea.vmem %s8, %s645
        $region52: #{tpu_custom_call.1} parent=15 // pred_fallthru
          _
        // Predicated region
        $region53: #{tpu_custom_call.1} parent=15 // pred_check
          %p647 = pneg %p300
        $region54: #{tpu_custom_call.1} parent=15 // pred_check_branch
          %649 = sbr.rel (%p647) target = $region56
        $region55: #{tpu_custom_call.1} parent=15 // pred_region
          %s650 = sand.u32 %s290, 1
          %s651 = scalar_lea.sflag [#allocation3], %s650
          %s652 = sand.u32 %s290, 1
          %s653 = smul.addr %s652, 32
          %s654 = scalar_lea.vmem [#allocation2], %s653
          %s656 = ssub.s32 512, 512
          %657 = vsyncadd %s651, %s656
          %s658 = smul.addr %s42, 4
          %s659 = smul.addr %s658, 128
          %s660 = scalar_lea.hbm %s9, %s659
          %s661 = sshll.u32 %s654, 4
          %s662 = int_to_ptr.vmem [resolvable:$true] %s661
          %667 = dma.hbm_to_vmem [thread:$0]  %s660, 512, %s662, %s651, 128, 128, 8
        $region56: #{tpu_custom_call.1} parent=15 // pred_fallthru
          _
        // Predicated region
        $region57: #{tpu_custom_call.1} parent=15 // pred_check
          %p668 = pneg %p326
        $region58: #{tpu_custom_call.1} parent=15 // pred_check_branch
          %670 = sbr.rel (%p668) target = $region60
        $region59: #{tpu_custom_call.1} parent=15 // pred_region
          %p671 = scmp.lt.s32.totalorder %s42, 1
          %s672 = scalar_select %p671, %s42, 1
          %s673 = scalar_lea.vmem %s10, %s672
        $region60: #{tpu_custom_call.1} parent=15 // pred_fallthru
          _
        // Predicated region
        $region61: #{tpu_custom_call.1} parent=15 // pred_check
          %p674 = pneg %p352
        $region62: #{tpu_custom_call.1} parent=15 // pred_check_branch
          %676 = sbr.rel (%p674) target = $region64
        $region63: #{tpu_custom_call.1} parent=15 // pred_region
          %p677 = scmp.lt.s32.totalorder %s42, 1
          %s678 = scalar_select %p677, %s42, 1
          %s679 = scalar_lea.vmem %s11, %s678
        $region64: #{tpu_custom_call.1} parent=15 // pred_fallthru
          _
        // Predicated region
        $region65: #{tpu_custom_call.1} parent=15 // pred_check
          %p680 = pneg %p378
        $region66: #{tpu_custom_call.1} parent=15 // pred_check_branch
          %682 = sbr.rel (%p680) target = $region68
        $region67: #{tpu_custom_call.1} parent=15 // pred_region
          %p683 = scmp.lt.s32.totalorder %s42, 1
          %s684 = scalar_select %p683, %s42, 1
          %s685 = scalar_lea.vmem %s12, %s684
        $region68: #{tpu_custom_call.1} parent=15 // pred_fallthru
          _
        // Predicated region
        $region69: #{tpu_custom_call.1} parent=15 // pred_check
          %p686 = pneg %p404
        $region70: #{tpu_custom_call.1} parent=15 // pred_check_branch
          %688 = sbr.rel (%p686) target = $region72
        $region71: #{tpu_custom_call.1} parent=15 // pred_region
          %s689 = sand.u32 %s394, 1
          %s690 = scalar_lea.sflag [#allocation6], %s689
          %s691 = sand.u32 %s394, 1
          %s692 = smul.addr %s691, 32
          %s693 = scalar_lea.vmem [#allocation5], %s692
          %s695 = ssub.s32 512, 512
          %696 = vsyncadd %s690, %s695
          %s697 = smul.addr %s42, 4
          %s698 = smul.addr %s697, 128
          %s699 = scalar_lea.hbm %s13, %s698
          %s700 = sshll.u32 %s693, 4
          %s701 = int_to_ptr.vmem [resolvable:$true] %s700
          %706 = dma.hbm_to_vmem [thread:$0]  %s699, 512, %s701, %s690, 128, 128, 8
        $region72: #{tpu_custom_call.1} parent=15 // pred_fallthru
          _
        // Predicated region
        $region73: #{tpu_custom_call.1} parent=15 // pred_check
          %p707 = pneg %p430
        $region74: #{tpu_custom_call.1} parent=15 // pred_check_branch
          %709 = sbr.rel (%p707) target = $region76
        $region75: #{tpu_custom_call.1} parent=15 // pred_region
          %p710 = scmp.lt.s32.totalorder %s42, 1
          %s711 = scalar_select %p710, %s42, 1
          %s712 = scalar_lea.vmem %s14, %s711
        $region76: #{tpu_custom_call.1} parent=15 // pred_fallthru
          _
        // Predicated region
        $region77: #{tpu_custom_call.1} parent=15 // pred_check
          %p713 = pneg %p456
        $region78: #{tpu_custom_call.1} parent=15 // pred_check_branch
          %715 = sbr.rel (%p713) target = $region80
        $region79: #{tpu_custom_call.1} parent=15 // pred_region
          %p716 = scmp.lt.s32.totalorder %s42, 1
          %s717 = scalar_select %p716, %s42, 1
          %s718 = smul.addr %s717, 8
          %s719 = smul.addr %s718, 8
          %s720 = scalar_lea.vmem %s15, %s719
        $region80: #{tpu_custom_call.1} parent=15 // pred_fallthru
          _
        // Predicated region
        $region81: #{tpu_custom_call.1} parent=15 // pred_check
          %p721 = pneg %p482
        $region82: #{tpu_custom_call.1} parent=15 // pred_check_branch
          %723 = sbr.rel (%p721) target = $region84
        $region83: #{tpu_custom_call.1} parent=15 // pred_region
          %p724 = scmp.lt.s32.totalorder %s42, 1
          %s725 = scalar_select %p724, %s42, 1
          %s726 = scalar_lea.vmem %s16, %s725
        $region84: #{tpu_custom_call.1} parent=15 // pred_fallthru
          _
        // Predicated region
        $region85: #{tpu_custom_call.1} parent=15 // pred_check
          %p727 = pneg %p508
        $region86: #{tpu_custom_call.1} parent=15 // pred_check_branch
          %729 = sbr.rel (%p727) target = $region88
        $region87: #{tpu_custom_call.1} parent=15 // pred_region
          %p730 = scmp.lt.s32.totalorder %s42, 1
          %s731 = scalar_select %p730, %s42, 1
          %s732 = scalar_lea.vmem %s17, %s731
        $region88: #{tpu_custom_call.1} parent=15 // pred_fallthru
          _
        // Predicated region
        $region89: #{tpu_custom_call.1} parent=15 // pred_check
          %p733 = pneg %p534
        $region90: #{tpu_custom_call.1} parent=15 // pred_check_branch
          %735 = sbr.rel (%p733) target = $region92
        $region91: #{tpu_custom_call.1} parent=15 // pred_region
          %p736 = scmp.lt.s32.totalorder %s42, 1
          %s737 = scalar_select %p736, %s42, 1
          %s738 = scalar_lea.vmem %s18, %s737
        $region92: #{tpu_custom_call.1} parent=15 // pred_fallthru
          _
      $region16: #{tpu_custom_call.1} parent=5 // pred_fallthru
        _
      %p739 = scmp.le.s32.totalorder 1, %s34
      %p740 = scmp.lt.s32.totalorder %s34, 5
      %p741 = pnand %p739, %p740
      %p742 = pneg %p741
      // Predicated region
      $region93: #{tpu_custom_call.1} parent=5 // pred_check
        _
      $region94: #{tpu_custom_call.1} parent=5 // pred_check_branch
        %744 = sbr.rel (%p741) target = $region96
      $region95: #{tpu_custom_call.1} parent=5 // pred_region
        %s745 = ssub.s32 %s34, 1
        %s746 = sand.u32 %s293, 1
        %s747 = scalar_lea.sflag [#allocation3], %s746
        %s748 = sand.u32 %s293, 1
        %s749 = smul.addr %s748, 32
        %s750 = scalar_lea.vmem [#allocation2], %s749
        // Predicated region
        $region97: #{tpu_custom_call.1} parent=95 // pred_check
          %p751 = pneg %p306
        $region98: #{tpu_custom_call.1} parent=95 // pred_check_branch
          %753 = sbr.rel (%p751) target = $region100
        $region99: #{tpu_custom_call.1} parent=95 // pred_region
          %754 = dma.done %s747, 512
        $region100: #{tpu_custom_call.1} parent=95 // pred_fallthru
          _
        %s755 = sand.u32 %s397, 1
        %s756 = scalar_lea.sflag [#allocation6], %s755
        %s757 = sand.u32 %s397, 1
        %s758 = smul.addr %s757, 32
        %s759 = scalar_lea.vmem [#allocation5], %s758
        // Predicated region
        $region101: #{tpu_custom_call.1} parent=95 // pred_check
          %p760 = pneg %p410
        $region102: #{tpu_custom_call.1} parent=95 // pred_check_branch
          %762 = sbr.rel (%p760) target = $region104
        $region103: #{tpu_custom_call.1} parent=95 // pred_region
          %763 = dma.done %s756, 512
        $region104: #{tpu_custom_call.1} parent=95 // pred_fallthru
          _
        %p764 = scmp.lt.s32.totalorder %s43, 1
        %s765 = scalar_select %p764, %s43, 1
        %s766 = smul.addr %s765, 8
        %s767 = scalar_lea.vmem %s0, %s766
        %p768 = pneg %p72
        %p769 = pneg %p69
        %p770 = scmp.lt.s32.totalorder %s43, 1
        %s771 = scalar_select %p770, %s43, 1
        %s772 = smul.addr %s771, 8
        %s773 = scalar_lea.vmem %s1, %s772
        %p774 = pneg %p98
        %p775 = pneg %p95
        %p776 = scmp.lt.s32.totalorder %s43, 1
        %s777 = scalar_select %p776, %s43, 1
        %s778 = scalar_lea.vmem %s2, %s777
        %p779 = pneg %p124
        %p780 = pneg %p121
        %p781 = scmp.lt.s32.totalorder %s44, 1
        %s782 = scalar_select %p781, %s44, 1
        %s783 = smul.addr %s782, 4
        %s784 = smul.addr %s783, 8
        %s785 = scalar_lea.vmem %s3, %s784
        %p786 = pneg %p150
        %p787 = pneg %p147
        %p788 = scmp.lt.s32.totalorder %s44, 1
        %s789 = scalar_select %p788, %s44, 1
        %s790 = scalar_lea.vmem %s4, %s789
        %p791 = pneg %p176
        %p792 = pneg %p173
        %p793 = scmp.lt.s32.totalorder %s44, 1
        %s794 = scalar_select %p793, %s44, 1
        %s795 = smul.addr %s794, 4
        %s796 = smul.addr %s795, 8
        %s797 = scalar_lea.vmem %s5, %s796
        %p798 = pneg %p202
        %p799 = pneg %p199
        %p800 = scmp.lt.s32.totalorder %s44, 1
        %s801 = scalar_select %p800, %s44, 1
        %s802 = scalar_lea.vmem %s6, %s801
        %p803 = pneg %p228
        %p804 = pneg %p225
        %p805 = scmp.lt.s32.totalorder %s44, 1
        %s806 = scalar_select %p805, %s44, 1
        %s807 = smul.addr %s806, 4
        %s808 = smul.addr %s807, 8
        %s809 = scalar_lea.vmem %s7, %s808
        %p810 = pneg %p254
        %p811 = pneg %p251
        %p812 = scmp.lt.s32.totalorder %s44, 1
        %s813 = scalar_select %p812, %s44, 1
        %s814 = scalar_lea.vmem %s8, %s813
        %p815 = pneg %p280
        %p816 = pneg %p277
        %s817 = sand.u32 %s293, 1
        %s818 = scalar_lea.sflag [#allocation3], %s817
        %s819 = sand.u32 %s293, 1
        %s820 = smul.addr %s819, 32
        %s821 = scalar_lea.vmem [#allocation2], %s820
        %p822 = pneg %p306
        %p823 = pneg %p303
        %p824 = scmp.lt.s32.totalorder %s44, 1
        %s825 = scalar_select %p824, %s44, 1
        %s826 = scalar_lea.vmem %s10, %s825
        %p827 = pneg %p332
        %p828 = pneg %p329
        %p829 = scmp.lt.s32.totalorder %s44, 1
        %s830 = scalar_select %p829, %s44, 1
        %s831 = scalar_lea.vmem %s11, %s830
        %p832 = pneg %p358
        %p833 = pneg %p355
        %p834 = scmp.lt.s32.totalorder %s44, 1
        %s835 = scalar_select %p834, %s44, 1
        %s836 = scalar_lea.vmem %s12, %s835
        %p837 = pneg %p384
        %p838 = pneg %p381
        %s839 = sand.u32 %s397, 1
        %s840 = scalar_lea.sflag [#allocation6], %s839
        %s841 = sand.u32 %s397, 1
        %s842 = smul.addr %s841, 32
        %s843 = scalar_lea.vmem [#allocation5], %s842
        %p844 = pneg %p410
        %p845 = pneg %p407
        %p846 = scmp.lt.s32.totalorder %s44, 1
        %s847 = scalar_select %p846, %s44, 1
        %s848 = scalar_lea.vmem %s14, %s847
        %p849 = pneg %p436
        %p850 = pneg %p433
        %p851 = scmp.lt.s32.totalorder %s44, 1
        %s852 = scalar_select %p851, %s44, 1
        %s853 = smul.addr %s852, 8
        %s854 = smul.addr %s853, 8
        %s855 = scalar_lea.vmem %s15, %s854
        %p856 = pneg %p462
        %p857 = pneg %p459
        %p858 = scmp.lt.s32.totalorder %s44, 1
        %s859 = scalar_select %p858, %s44, 1
        %s860 = scalar_lea.vmem %s16, %s859
        %p861 = pneg %p488
        %p862 = pneg %p485
        %p863 = scmp.lt.s32.totalorder %s44, 1
        %s864 = scalar_select %p863, %s44, 1
        %s865 = scalar_lea.vmem %s17, %s864
        %p866 = pneg %p514
        %p867 = pneg %p511
        %p868 = scmp.lt.s32.totalorder %s44, 1
        %s869 = scalar_select %p868, %s44, 1
        %s870 = scalar_lea.vmem %s18, %s869
        %p871 = pneg %p540
        %p872 = pneg %p537
        %p873 = pneg %p566
        %p874 = pneg %p563
        %s875 = sand.u32 %s553, 1
        %s876 = scalar_lea.sflag [#allocation4], %s875
        %s877 = sand.u32 %s553, 1
        %s878 = smul.addr %s877, 8
        %s879 = scalar_lea.vmem [#allocation7], %s878
        %p880 = scmp.lt.s32.totalorder %s43, 1
        %s881 = scalar_select %p880, %s43, 1
        %s882 = smul.addr %s881, 8
        %s883 = scalar_lea.vmem %s0, %s882
        %p884 = scmp.lt.s32.totalorder %s43, 1
        %s885 = scalar_select %p884, %s43, 1
        %s886 = smul.addr %s885, 8
        %s887 = scalar_lea.vmem %s1, %s886
        %p888 = scmp.lt.s32.totalorder %s43, 1
        %s889 = scalar_select %p888, %s43, 1
        %s890 = scalar_lea.vmem %s2, %s889
        %p891 = scmp.lt.s32.totalorder %s44, 1
        %s892 = scalar_select %p891, %s44, 1
        %s893 = smul.addr %s892, 4
        %s894 = smul.addr %s893, 8
        %s895 = scalar_lea.vmem %s3, %s894
        %p896 = scmp.lt.s32.totalorder %s44, 1
        %s897 = scalar_select %p896, %s44, 1
        %s898 = scalar_lea.vmem %s4, %s897
        %p899 = scmp.lt.s32.totalorder %s44, 1
        %s900 = scalar_select %p899, %s44, 1
        %s901 = smul.addr %s900, 4
        %s902 = smul.addr %s901, 8
        %s903 = scalar_lea.vmem %s5, %s902
        %p904 = scmp.lt.s32.totalorder %s44, 1
        %s905 = scalar_select %p904, %s44, 1
        %s906 = scalar_lea.vmem %s6, %s905
        %p907 = scmp.lt.s32.totalorder %s44, 1
        %s908 = scalar_select %p907, %s44, 1
        %s909 = smul.addr %s908, 4
        %s910 = smul.addr %s909, 8
        %s911 = scalar_lea.vmem %s7, %s910
        %p912 = scmp.lt.s32.totalorder %s44, 1
        %s913 = scalar_select %p912, %s44, 1
        %s914 = scalar_lea.vmem %s8, %s913
        %p915 = scmp.lt.s32.totalorder %s44, 1
        %s916 = scalar_select %p915, %s44, 1
        %s917 = scalar_lea.vmem %s10, %s916
        %p918 = scmp.lt.s32.totalorder %s44, 1
        %s919 = scalar_select %p918, %s44, 1
        %s920 = scalar_lea.vmem %s11, %s919
        %p921 = scmp.lt.s32.totalorder %s44, 1
        %s922 = scalar_select %p921, %s44, 1
        %s923 = scalar_lea.vmem %s12, %s922
        %p924 = scmp.lt.s32.totalorder %s44, 1
        %s925 = scalar_select %p924, %s44, 1
        %s926 = scalar_lea.vmem %s14, %s925
        %p927 = scmp.lt.s32.totalorder %s44, 1
        %s928 = scalar_select %p927, %s44, 1
        %s929 = smul.addr %s928, 8
        %s930 = smul.addr %s929, 8
        %s931 = scalar_lea.vmem %s15, %s930
        %p932 = scmp.lt.s32.totalorder %s44, 1
        %s933 = scalar_select %p932, %s44, 1
        %s934 = scalar_lea.vmem %s16, %s933
        %p935 = scmp.lt.s32.totalorder %s44, 1
        %s936 = scalar_select %p935, %s44, 1
        %s937 = scalar_lea.vmem %s17, %s936
        %p938 = scmp.lt.s32.totalorder %s44, 1
        %s939 = scalar_select %p938, %s44, 1
        %s940 = scalar_lea.vmem %s18, %s939
        %p941 = scmp.eq.s32.totalorder %s44, 0
        // Predicated region
        $region105: #{tpu_custom_call.1} parent=95 // pred_check
          %p942 = pneg %p941
        $region106: #{tpu_custom_call.1} parent=95 // pred_check_branch
          %944 = sbr.rel (%p942) target = $region108
        $region107: #{tpu_custom_call.1} parent=95 // pred_region
          %v945 = vld [vmem:[%s883] sm:$0xff]
          %vm946 = vcmask 261120
          %947 = vst.msk [vmem:[%s879] sm:$0xff] %vm946, %v945
        $region108: #{tpu_custom_call.1} parent=95 // pred_fallthru
          _
        %v948 = vld [vmem:[%s879] sm:$0xff]
        %v949 = vld [vmem:[%s887] sm:$0xff]
        %v950 = vld [vmem:[%s890] sm:$0x1]
        %v951 = vld [vmem:[%s895] sm:$0xff]
        %v952 = vld [vmem:[%s895 + $0x8] sm:$0xff]
        %v953 = vld [vmem:[%s895 + $0x10] sm:$0xff]
        %v954 = vld [vmem:[%s895 + $0x18] sm:$0xff]
        %v955 = vld [vmem:[%s898] sm:$0x1]
        %v957 = vlaneseq
        %v958 = vshrl.u32 %v957, 7
        %v959 = vsub.s32 0, %v958
        %v960 = vrot.slane %v955, %v959
        %vm962 = vcmask 261120
        %v964 = vsel %vm962, %v948, 0
        %966 = vmatprep.subr.mxu0 0.0
        %967 = vmatpush1.msra.mxu0 0.0
        %968 = vmatprep.subr.mxu0 0.0
        %969 = vmatpush1.msra.mxu0 0.0
        %970 = vmatprep.subr.mxu0 0.0
        %971 = vmatpush1.msra.mxu0 0.0
        %972 = vmatprep.subr.mxu0 0.0
        %973 = vmatpush1.msra.mxu0 0.0
        %974 = vmatprep.subr.mxu0 0.0
        %975 = vmatpush1.msra.mxu0 0.0
        %976 = vmatprep.subr.mxu0 0.0
        %977 = vmatpush1.msra.mxu0 0.0
        %978 = vmatprep.subr.mxu0 0.0
        %979 = vmatpush1.msra.mxu0 0.0
        %980 = vmatprep.subr.mxu0 0.0
        %981 = vmatpush1.msra.mxu0 0.0
        %982 = vmatprep.subr.mxu0 0.0
        %983 = vmatpush1.msra.mxu0 0.0
        %984 = vmatprep.subr.mxu0 0.0
        %985 = vmatpush1.msra.mxu0 0.0
        %986 = vmatprep.subr.mxu0 0.0
        %987 = vmatpush1.msra.mxu0 0.0
        %988 = vmatprep.subr.mxu0 0.0
        %989 = vmatpush1.msra.mxu0 0.0
        %990 = vmatprep.subr.mxu0 0.0
        %991 = vmatpush1.msra.mxu0 %v954
        %992 = vmatprep.subr.mxu0 0.0
        %993 = vmatpush1.msra.mxu0 %v953
        %994 = vmatprep.subr.mxu0 0.0
        %995 = vmatpush1.msra.mxu0 %v952
        %996 = vmatprep.subr.mxu0 0.0
        %997 = vmatpush1.msra.mxu0 %v951
        %998 = vmatprep.subr.mxu0 0.0
        %999 = vmatpush2.msra.mxu0 0.0
        %1000 = vmatprep.subr.mxu0 0.0
        %1001 = vmatpush2.msra.mxu0 0.0
        %1002 = vmatprep.subr.mxu0 0.0
        %1003 = vmatpush2.msra.mxu0 0.0
        %1004 = vmatprep.subr.mxu0 0.0
        %1005 = vmatpush2.msra.mxu0 0.0
        %1006 = vmatprep.subr.mxu0 0.0
        %1007 = vmatpush2.msra.mxu0 0.0
        %1008 = vmatprep.subr.mxu0 0.0
        %1009 = vmatpush2.msra.mxu0 0.0
        %1010 = vmatprep.subr.mxu0 0.0
        %1011 = vmatpush2.msra.mxu0 0.0
        %1012 = vmatprep.subr.mxu0 0.0
        %1013 = vmatpush2.msra.mxu0 0.0
        %1014 = vmatprep.subr.mxu0 0.0
        %1015 = vmatpush2.msra.mxu0 0.0
        %1016 = vmatprep.subr.mxu0 0.0
        %1017 = vmatpush2.msra.mxu0 0.0
        %1018 = vmatprep.subr.mxu0 0.0
        %1019 = vmatpush2.msra.mxu0 0.0
        %1020 = vmatprep.subr.mxu0 0.0
        %1021 = vmatpush2.msra.mxu0 0.0
        %1022 = vmatprep.subr.mxu0 0.0
        %1023 = vmatpush2.msra.mxu0 0.0
        %1024 = vmatprep.subr.mxu0 0.0
        %1025 = vmatpush2.msra.mxu0 0.0
        %1026 = vmatprep.subr.mxu0 0.0
        %1027 = vmatpush2.msra.mxu0 0.0
        %1028 = vmatprep.subr.mxu0 0.0
        %1029 = vmatpush2.msra.mxu0 0.0
        %1030 = vmatprep.mubr.f32.mxu0 0.0
        %1031 = vmatmul.mubr.f32.gmra.mxu0 %v964
        %v1032 = vpop.f32.mrf.mxu0
        %v1033 = vadd.f32 %v960, %v1032
        %v1034 = vpop.f32.mrf.mxu0
        %1035 = vdwg.mxu0
        %v1036 = vld [vmem:[%s903] sm:$0xff]
        %v1037 = vld [vmem:[%s903 + $0x8] sm:$0xff]
        %v1038 = vld [vmem:[%s903 + $0x10] sm:$0xff]
        %v1039 = vld [vmem:[%s903 + $0x18] sm:$0xff]
        %v1040 = vld [vmem:[%s906] sm:$0x1]
        %v1042 = vlaneseq
        %v1043 = vshrl.u32 %v1042, 7
        %v1044 = vsub.s32 0, %v1043
        %v1045 = vrot.slane %v1040, %v1044
        %1047 = vmatprep.subr.mxu0 0.0
        %1048 = vmatpush1.msra.mxu0 0.0
        %1049 = vmatprep.subr.mxu0 0.0
        %1050 = vmatpush1.msra.mxu0 0.0
        %1051 = vmatprep.subr.mxu0 0.0
        %1052 = vmatpush1.msra.mxu0 0.0
        %1053 = vmatprep.subr.mxu0 0.0
        %1054 = vmatpush1.msra.mxu0 0.0
        %1055 = vmatprep.subr.mxu0 0.0
        %1056 = vmatpush1.msra.mxu0 0.0
        %1057 = vmatprep.subr.mxu0 0.0
        %1058 = vmatpush1.msra.mxu0 0.0
        %1059 = vmatprep.subr.mxu0 0.0
        %1060 = vmatpush1.msra.mxu0 0.0
        %1061 = vmatprep.subr.mxu0 0.0
        %1062 = vmatpush1.msra.mxu0 0.0
        %1063 = vmatprep.subr.mxu0 0.0
        %1064 = vmatpush1.msra.mxu0 0.0
        %1065 = vmatprep.subr.mxu0 0.0
        %1066 = vmatpush1.msra.mxu0 0.0
        %1067 = vmatprep.subr.mxu0 0.0
        %1068 = vmatpush1.msra.mxu0 0.0
        %1069 = vmatprep.subr.mxu0 0.0
        %1070 = vmatpush1.msra.mxu0 0.0
        %1071 = vmatprep.subr.mxu0 0.0
        %1072 = vmatpush1.msra.mxu0 %v1039
        %1073 = vmatprep.subr.mxu0 0.0
        %1074 = vmatpush1.msra.mxu0 %v1038
        %1075 = vmatprep.subr.mxu0 0.0
        %1076 = vmatpush1.msra.mxu0 %v1037
        %1077 = vmatprep.subr.mxu0 0.0
        %1078 = vmatpush1.msra.mxu0 %v1036
        %1079 = vmatprep.subr.mxu0 0.0
        %1080 = vmatpush2.msra.mxu0 0.0
        %1081 = vmatprep.subr.mxu0 0.0
        %1082 = vmatpush2.msra.mxu0 0.0
        %1083 = vmatprep.subr.mxu0 0.0
        %1084 = vmatpush2.msra.mxu0 0.0
        %1085 = vmatprep.subr.mxu0 0.0
        %1086 = vmatpush2.msra.mxu0 0.0
        %1087 = vmatprep.subr.mxu0 0.0
        %1088 = vmatpush2.msra.mxu0 0.0
        %1089 = vmatprep.subr.mxu0 0.0
        %1090 = vmatpush2.msra.mxu0 0.0
        %1091 = vmatprep.subr.mxu0 0.0
        %1092 = vmatpush2.msra.mxu0 0.0
        %1093 = vmatprep.subr.mxu0 0.0
        %1094 = vmatpush2.msra.mxu0 0.0
        %1095 = vmatprep.subr.mxu0 0.0
        %1096 = vmatpush2.msra.mxu0 0.0
        %1097 = vmatprep.subr.mxu0 0.0
        %1098 = vmatpush2.msra.mxu0 0.0
        %1099 = vmatprep.subr.mxu0 0.0
        %1100 = vmatpush2.msra.mxu0 0.0
        %1101 = vmatprep.subr.mxu0 0.0
        %1102 = vmatpush2.msra.mxu0 0.0
        %1103 = vmatprep.subr.mxu0 0.0
        %1104 = vmatpush2.msra.mxu0 0.0
        %1105 = vmatprep.subr.mxu0 0.0
        %1106 = vmatpush2.msra.mxu0 0.0
        %1107 = vmatprep.subr.mxu0 0.0
        %1108 = vmatpush2.msra.mxu0 0.0
        %1109 = vmatprep.subr.mxu0 0.0
        %1110 = vmatpush2.msra.mxu0 0.0
        %1111 = vmatprep.mubr.f32.mxu0 0.0
        %1112 = vmatmul.mubr.f32.gmra.mxu0 %v964
        %v1113 = vpop.f32.mrf.mxu0
        %v1114 = vadd.f32 %v1045, %v1113
        %v1115 = vpop.f32.mrf.mxu0
        %1116 = vdwg.mxu0
        %v1117 = vld [vmem:[%s911] sm:$0xff]
        %v1118 = vld [vmem:[%s911 + $0x8] sm:$0xff]
        %v1119 = vld [vmem:[%s911 + $0x10] sm:$0xff]
        %v1120 = vld [vmem:[%s911 + $0x18] sm:$0xff]
        %v1121 = vld [vmem:[%s914] sm:$0x1]
        %v1123 = vlaneseq
        %v1124 = vshrl.u32 %v1123, 7
        %v1125 = vsub.s32 0, %v1124
        %v1126 = vrot.slane %v1121, %v1125
        %1128 = vmatprep.subr.mxu0 0.0
        %1129 = vmatpush1.msra.mxu0 0.0
        %1130 = vmatprep.subr.mxu0 0.0
        %1131 = vmatpush1.msra.mxu0 0.0
        %1132 = vmatprep.subr.mxu0 0.0
        %1133 = vmatpush1.msra.mxu0 0.0
        %1134 = vmatprep.subr.mxu0 0.0
        %1135 = vmatpush1.msra.mxu0 0.0
        %1136 = vmatprep.subr.mxu0 0.0
        %1137 = vmatpush1.msra.mxu0 0.0
        %1138 = vmatprep.subr.mxu0 0.0
        %1139 = vmatpush1.msra.mxu0 0.0
        %1140 = vmatprep.subr.mxu0 0.0
        %1141 = vmatpush1.msra.mxu0 0.0
        %1142 = vmatprep.subr.mxu0 0.0
        %1143 = vmatpush1.msra.mxu0 0.0
        %1144 = vmatprep.subr.mxu0 0.0
        %1145 = vmatpush1.msra.mxu0 0.0
        %1146 = vmatprep.subr.mxu0 0.0
        %1147 = vmatpush1.msra.mxu0 0.0
        %1148 = vmatprep.subr.mxu0 0.0
        %1149 = vmatpush1.msra.mxu0 0.0
        %1150 = vmatprep.subr.mxu0 0.0
        %1151 = vmatpush1.msra.mxu0 0.0
        %1152 = vmatprep.subr.mxu0 0.0
        %1153 = vmatpush1.msra.mxu0 %v1120
        %1154 = vmatprep.subr.mxu0 0.0
        %1155 = vmatpush1.msra.mxu0 %v1119
        %1156 = vmatprep.subr.mxu0 0.0
        %1157 = vmatpush1.msra.mxu0 %v1118
        %1158 = vmatprep.subr.mxu0 0.0
        %1159 = vmatpush1.msra.mxu0 %v1117
        %1160 = vmatprep.subr.mxu0 0.0
        %1161 = vmatpush2.msra.mxu0 0.0
        %1162 = vmatprep.subr.mxu0 0.0
        %1163 = vmatpush2.msra.mxu0 0.0
        %1164 = vmatprep.subr.mxu0 0.0
        %1165 = vmatpush2.msra.mxu0 0.0
        %1166 = vmatprep.subr.mxu0 0.0
        %1167 = vmatpush2.msra.mxu0 0.0
        %1168 = vmatprep.subr.mxu0 0.0
        %1169 = vmatpush2.msra.mxu0 0.0
        %1170 = vmatprep.subr.mxu0 0.0
        %1171 = vmatpush2.msra.mxu0 0.0
        %1172 = vmatprep.subr.mxu0 0.0
        %1173 = vmatpush2.msra.mxu0 0.0
        %1174 = vmatprep.subr.mxu0 0.0
        %1175 = vmatpush2.msra.mxu0 0.0
        %1176 = vmatprep.subr.mxu0 0.0
        %1177 = vmatpush2.msra.mxu0 0.0
        %1178 = vmatprep.subr.mxu0 0.0
        %1179 = vmatpush2.msra.mxu0 0.0
        %1180 = vmatprep.subr.mxu0 0.0
        %1181 = vmatpush2.msra.mxu0 0.0
        %1182 = vmatprep.subr.mxu0 0.0
        %1183 = vmatpush2.msra.mxu0 0.0
        %1184 = vmatprep.subr.mxu0 0.0
        %1185 = vmatpush2.msra.mxu0 0.0
        %1186 = vmatprep.subr.mxu0 0.0
        %1187 = vmatpush2.msra.mxu0 0.0
        %1188 = vmatprep.subr.mxu0 0.0
        %1189 = vmatpush2.msra.mxu0 0.0
        %1190 = vmatprep.subr.mxu0 0.0
        %1191 = vmatpush2.msra.mxu0 0.0
        %1192 = vmatprep.mubr.f32.mxu0 0.0
        %1193 = vmatmul.mubr.f32.gmra.mxu0 %v964
        %v1194 = vpop.f32.mrf.mxu0
        %v1195 = vadd.f32 %v1126, %v1194
        %v1196 = vpop.f32.mrf.mxu0
        %1197 = vdwg.mxu0
        %v1198 = vld [vmem:[%s750] sm:$0xff]
        %v1199 = vld [vmem:[%s750 + $0x8] sm:$0xff]
        %v1200 = vld [vmem:[%s750 + $0x10] sm:$0xff]
        %v1201 = vld [vmem:[%s750 + $0x18] sm:$0xff]
        %vm1202 = vcmask 130048
        %v1204 = vsel %vm1202, %v1033, 0
        %v1207 = vsel %vm1202, %v1114, 0
        %1209 = vmatprep.subr.mxu0 0.0
        %1210 = vmatpush1.xpose.msra.mxu0 0.0
        %1211 = vmatprep.subr.mxu0 0.0
        %1212 = vmatpush1.xpose.msra.mxu0 0.0
        %1213 = vmatprep.subr.mxu0 0.0
        %1214 = vmatpush1.xpose.msra.mxu0 0.0
        %1215 = vmatprep.subr.mxu0 0.0
        %1216 = vmatpush1.xpose.msra.mxu0 0.0
        %1217 = vmatprep.subr.mxu0 0.0
        %1218 = vmatpush1.xpose.msra.mxu0 0.0
        %1219 = vmatprep.subr.mxu0 0.0
        %1220 = vmatpush1.xpose.msra.mxu0 0.0
        %1221 = vmatprep.subr.mxu0 0.0
        %1222 = vmatpush1.xpose.msra.mxu0 0.0
        %1223 = vmatprep.subr.mxu0 0.0
        %1224 = vmatpush1.xpose.msra.mxu0 0.0
        %1225 = vmatprep.subr.mxu0 0.0
        %1226 = vmatpush1.xpose.msra.mxu0 0.0
        %1227 = vmatprep.subr.mxu0 0.0
        %1228 = vmatpush1.xpose.msra.mxu0 0.0
        %1229 = vmatprep.subr.mxu0 0.0
        %1230 = vmatpush1.xpose.msra.mxu0 0.0
        %1231 = vmatprep.subr.mxu0 0.0
        %1232 = vmatpush1.xpose.msra.mxu0 0.0
        %1233 = vmatprep.subr.mxu0 0.0
        %1234 = vmatpush1.xpose.msra.mxu0 0.0
        %1235 = vmatprep.subr.mxu0 0.0
        %1236 = vmatpush1.xpose.msra.mxu0 0.0
        %1237 = vmatprep.subr.mxu0 0.0
        %1238 = vmatpush1.xpose.msra.mxu0 0.0
        %1239 = vmatprep.subr.mxu0 0.0
        %1240 = vmatpush1.xpose.msra.mxu0 %v1207
        %1241 = vmatprep.subr.mxu0 0.0
        %1242 = vmatpush2.xpose.msra.mxu0 0.0
        %1243 = vmatprep.subr.mxu0 0.0
        %1244 = vmatpush2.xpose.msra.mxu0 0.0
        %1245 = vmatprep.subr.mxu0 0.0
        %1246 = vmatpush2.xpose.msra.mxu0 0.0
        %1247 = vmatprep.subr.mxu0 0.0
        %1248 = vmatpush2.xpose.msra.mxu0 0.0
        %1249 = vmatprep.subr.mxu0 0.0
        %1250 = vmatpush2.xpose.msra.mxu0 0.0
        %1251 = vmatprep.subr.mxu0 0.0
        %1252 = vmatpush2.xpose.msra.mxu0 0.0
        %1253 = vmatprep.subr.mxu0 0.0
        %1254 = vmatpush2.xpose.msra.mxu0 0.0
        %1255 = vmatprep.subr.mxu0 0.0
        %1256 = vmatpush2.xpose.msra.mxu0 0.0
        %1257 = vmatprep.subr.mxu0 0.0
        %1258 = vmatpush2.xpose.msra.mxu0 0.0
        %1259 = vmatprep.subr.mxu0 0.0
        %1260 = vmatpush2.xpose.msra.mxu0 0.0
        %1261 = vmatprep.subr.mxu0 0.0
        %1262 = vmatpush2.xpose.msra.mxu0 0.0
        %1263 = vmatprep.subr.mxu0 0.0
        %1264 = vmatpush2.xpose.msra.mxu0 0.0
        %1265 = vmatprep.subr.mxu0 0.0
        %1266 = vmatpush2.xpose.msra.mxu0 0.0
        %1267 = vmatprep.subr.mxu0 0.0
        %1268 = vmatpush2.xpose.msra.mxu0 0.0
        %1269 = vmatprep.subr.mxu0 0.0
        %1270 = vmatpush2.xpose.msra.mxu0 0.0
        %1271 = vmatprep.subr.mxu0 0.0
        %1272 = vmatpush2.xpose.msra.mxu0 0.0
        %1273 = vmatprep.mubr.f32.mxu0 0.0
        %1274 = vmatmul.mubr.f32.gmra.mxu0 %v1204
        %v1275 = vpop.f32.mrf.mxu0
        %v1276 = vadd.f32 0.0, %v1275
        %v1277 = vpop.f32.mrf.mxu0
        %1278 = vdwg.mxu0
        %v1279 = vmul.f32 %v1276, 0.25
        %v1281 = vlaneseq
        %v1282 = vshrl.u32 %v1281, 7
        %v1283 = vsub.s32 0, %v1282
        %v1284 = vrot.slane %v950, %v1283
        %v1286 = vadd.f32 %v1279, %v1284
        %vm1287 = vcmask 64512
        %v1288 = vsel %vm1287, %v1286, -inf
        %1289 = vmax.xlane.f32.xlu0 %v1288
        %v1290 = vpop.xlane.xlu0 %1289
        %v1291 = vsub.f32 %v1286, %v1290
        %v1292 = vmul.f32 %v1291, 1.442695
        %v1293 = vpow.pop %v1292
        %v1294 = vsel %vm1287, %v1293, 0.0
        %1295 = vadd.xlane.f32.xlu0 %v1294
        %v1296 = vpop.xlane.xlu0 %1295
        %v1297 = vrcp.pop %v1296
        %v1298 = vmul.f32 %v1293, %v1297
        %v1300 = vsel %vm1287, %v1298, 0
        %1302 = vmatprep.subr.mxu0 0.0
        %1303 = vmatpush1.msra.mxu0 0.0
        %1304 = vmatprep.subr.mxu0 0.0
        %1305 = vmatpush1.msra.mxu0 0.0
        %1306 = vmatprep.subr.mxu0 0.0
        %1307 = vmatpush1.msra.mxu0 0.0
        %1308 = vmatprep.subr.mxu0 0.0
        %1309 = vmatpush1.msra.mxu0 0.0
        %1310 = vmatprep.subr.mxu0 0.0
        %1311 = vmatpush1.msra.mxu0 0.0
        %1312 = vmatprep.subr.mxu0 0.0
        %1313 = vmatpush1.msra.mxu0 0.0
        %1314 = vmatprep.subr.mxu0 0.0
        %1315 = vmatpush1.msra.mxu0 0.0
        %1316 = vmatprep.subr.mxu0 0.0
        %1317 = vmatpush1.msra.mxu0 0.0
        %1318 = vmatprep.subr.mxu0 0.0
        %1319 = vmatpush1.msra.mxu0 0.0
        %1320 = vmatprep.subr.mxu0 0.0
        %1321 = vmatpush1.msra.mxu0 0.0
        %1322 = vmatprep.subr.mxu0 0.0
        %1323 = vmatpush1.msra.mxu0 0.0
        %1324 = vmatprep.subr.mxu0 0.0
        %1325 = vmatpush1.msra.mxu0 0.0
        %1326 = vmatprep.subr.mxu0 0.0
        %1327 = vmatpush1.msra.mxu0 0.0
        %1328 = vmatprep.subr.mxu0 0.0
        %1329 = vmatpush1.msra.mxu0 0.0
        %1330 = vmatprep.subr.mxu0 0.0
        %1331 = vmatpush1.msra.mxu0 0.0
        %1332 = vmatprep.subr.mxu0 0.0
        %1333 = vmatpush1.msra.mxu0 %v1195
        %1334 = vmatprep.subr.mxu0 0.0
        %1335 = vmatpush2.msra.mxu0 0.0
        %1336 = vmatprep.subr.mxu0 0.0
        %1337 = vmatpush2.msra.mxu0 0.0
        %1338 = vmatprep.subr.mxu0 0.0
        %1339 = vmatpush2.msra.mxu0 0.0
        %1340 = vmatprep.subr.mxu0 0.0
        %1341 = vmatpush2.msra.mxu0 0.0
        %1342 = vmatprep.subr.mxu0 0.0
        %1343 = vmatpush2.msra.mxu0 0.0
        %1344 = vmatprep.subr.mxu0 0.0
        %1345 = vmatpush2.msra.mxu0 0.0
        %1346 = vmatprep.subr.mxu0 0.0
        %1347 = vmatpush2.msra.mxu0 0.0
        %1348 = vmatprep.subr.mxu0 0.0
        %1349 = vmatpush2.msra.mxu0 0.0
        %1350 = vmatprep.subr.mxu0 0.0
        %1351 = vmatpush2.msra.mxu0 0.0
        %1352 = vmatprep.subr.mxu0 0.0
        %1353 = vmatpush2.msra.mxu0 0.0
        %1354 = vmatprep.subr.mxu0 0.0
        %1355 = vmatpush2.msra.mxu0 0.0
        %1356 = vmatprep.subr.mxu0 0.0
        %1357 = vmatpush2.msra.mxu0 0.0
        %1358 = vmatprep.subr.mxu0 0.0
        %1359 = vmatpush2.msra.mxu0 0.0
        %1360 = vmatprep.subr.mxu0 0.0
        %1361 = vmatpush2.msra.mxu0 0.0
        %1362 = vmatprep.subr.mxu0 0.0
        %1363 = vmatpush2.msra.mxu0 0.0
        %1364 = vmatprep.subr.mxu0 0.0
        %1365 = vmatpush2.msra.mxu0 0.0
        %1366 = vmatprep.mubr.f32.mxu0 0.0
        %1367 = vmatmul.mubr.f32.gmra.mxu0 %v1300
        %v1368 = vpop.f32.mrf.mxu0
        %v1369 = vadd.f32 0.0, %v1368
        %v1370 = vpop.f32.mrf.mxu0
        %1371 = vdwg.mxu0
        %1372 = vrot.lane.b32.xlu0 %v1033, 112
        %v1373 = vpop.permute.xlu0 %1372
        %1374 = vrot.lane.b32.xlu0 %v1114, 112
        %v1375 = vpop.permute.xlu0 %1374
        %v1376 = vsel %vm1202, %v1373, 0
        %v1378 = vsel %vm1202, %v1375, 0
        %1380 = vmatprep.subr.mxu0 0.0
        %1381 = vmatpush1.xpose.msra.mxu0 0.0
        %1382 = vmatprep.subr.mxu0 0.0
        %1383 = vmatpush1.xpose.msra.mxu0 0.0
        %1384 = vmatprep.subr.mxu0 0.0
        %1385 = vmatpush1.xpose.msra.mxu0 0.0
        %1386 = vmatprep.subr.mxu0 0.0
        %1387 = vmatpush1.xpose.msra.mxu0 0.0
        %1388 = vmatprep.subr.mxu0 0.0
        %1389 = vmatpush1.xpose.msra.mxu0 0.0
        %1390 = vmatprep.subr.mxu0 0.0
        %1391 = vmatpush1.xpose.msra.mxu0 0.0
        %1392 = vmatprep.subr.mxu0 0.0
        %1393 = vmatpush1.xpose.msra.mxu0 0.0
        %1394 = vmatprep.subr.mxu0 0.0
        %1395 = vmatpush1.xpose.msra.mxu0 0.0
        %1396 = vmatprep.subr.mxu0 0.0
        %1397 = vmatpush1.xpose.msra.mxu0 0.0
        %1398 = vmatprep.subr.mxu0 0.0
        %1399 = vmatpush1.xpose.msra.mxu0 0.0
        %1400 = vmatprep.subr.mxu0 0.0
        %1401 = vmatpush1.xpose.msra.mxu0 0.0
        %1402 = vmatprep.subr.mxu0 0.0
        %1403 = vmatpush1.xpose.msra.mxu0 0.0
        %1404 = vmatprep.subr.mxu0 0.0
        %1405 = vmatpush1.xpose.msra.mxu0 0.0
        %1406 = vmatprep.subr.mxu0 0.0
        %1407 = vmatpush1.xpose.msra.mxu0 0.0
        %1408 = vmatprep.subr.mxu0 0.0
        %1409 = vmatpush1.xpose.msra.mxu0 0.0
        %1410 = vmatprep.subr.mxu0 0.0
        %1411 = vmatpush1.xpose.msra.mxu0 %v1378
        %1412 = vmatprep.subr.mxu0 0.0
        %1413 = vmatpush2.xpose.msra.mxu0 0.0
        %1414 = vmatprep.subr.mxu0 0.0
        %1415 = vmatpush2.xpose.msra.mxu0 0.0
        %1416 = vmatprep.subr.mxu0 0.0
        %1417 = vmatpush2.xpose.msra.mxu0 0.0
        %1418 = vmatprep.subr.mxu0 0.0
        %1419 = vmatpush2.xpose.msra.mxu0 0.0
        %1420 = vmatprep.subr.mxu0 0.0
        %1421 = vmatpush2.xpose.msra.mxu0 0.0
        %1422 = vmatprep.subr.mxu0 0.0
        %1423 = vmatpush2.xpose.msra.mxu0 0.0
        %1424 = vmatprep.subr.mxu0 0.0
        %1425 = vmatpush2.xpose.msra.mxu0 0.0
        %1426 = vmatprep.subr.mxu0 0.0
        %1427 = vmatpush2.xpose.msra.mxu0 0.0
        %1428 = vmatprep.subr.mxu0 0.0
        %1429 = vmatpush2.xpose.msra.mxu0 0.0
        %1430 = vmatprep.subr.mxu0 0.0
        %1431 = vmatpush2.xpose.msra.mxu0 0.0
        %1432 = vmatprep.subr.mxu0 0.0
        %1433 = vmatpush2.xpose.msra.mxu0 0.0
        %1434 = vmatprep.subr.mxu0 0.0
        %1435 = vmatpush2.xpose.msra.mxu0 0.0
        %1436 = vmatprep.subr.mxu0 0.0
        %1437 = vmatpush2.xpose.msra.mxu0 0.0
        %1438 = vmatprep.subr.mxu0 0.0
        %1439 = vmatpush2.xpose.msra.mxu0 0.0
        %1440 = vmatprep.subr.mxu0 0.0
        %1441 = vmatpush2.xpose.msra.mxu0 0.0
        %1442 = vmatprep.subr.mxu0 0.0
        %1443 = vmatpush2.xpose.msra.mxu0 0.0
        %1444 = vmatprep.mubr.f32.mxu0 0.0
        %1445 = vmatmul.mubr.f32.gmra.mxu0 %v1376
        %v1446 = vpop.f32.mrf.mxu0
        %v1447 = vadd.f32 0.0, %v1446
        %v1448 = vpop.f32.mrf.mxu0
        %1449 = vdwg.mxu0
        %v1450 = vmul.f32 %v1447, 0.25
        %v1451 = vadd.f32 %v1450, %v1284
        %v1452 = vsel %vm1287, %v1451, -inf
        %1453 = vmax.xlane.f32.xlu0 %v1452
        %v1454 = vpop.xlane.xlu0 %1453
        %v1455 = vsub.f32 %v1451, %v1454
        %v1456 = vmul.f32 %v1455, 1.442695
        %v1457 = vpow.pop %v1456
        %v1458 = vsel %vm1287, %v1457, 0.0
        %1459 = vadd.xlane.f32.xlu0 %v1458
        %v1460 = vpop.xlane.xlu0 %1459
        %v1461 = vrcp.pop %v1460
        %v1462 = vmul.f32 %v1457, %v1461
        %1464 = vrot.lane.b32.xlu0 %v1195, 112
        %v1465 = vpop.permute.xlu0 %1464
        %v1468 = vsel %vm1287, %v1462, 0
        %1470 = vmatprep.subr.mxu0 0.0
        %1471 = vmatpush1.msra.mxu0 0.0
        %1472 = vmatprep.subr.mxu0 0.0
        %1473 = vmatpush1.msra.mxu0 0.0
        %1474 = vmatprep.subr.mxu0 0.0
        %1475 = vmatpush1.msra.mxu0 0.0
        %1476 = vmatprep.subr.mxu0 0.0
        %1477 = vmatpush1.msra.mxu0 0.0
        %1478 = vmatprep.subr.mxu0 0.0
        %1479 = vmatpush1.msra.mxu0 0.0
        %1480 = vmatprep.subr.mxu0 0.0
        %1481 = vmatpush1.msra.mxu0 0.0
        %1482 = vmatprep.subr.mxu0 0.0
        %1483 = vmatpush1.msra.mxu0 0.0
        %1484 = vmatprep.subr.mxu0 0.0
        %1485 = vmatpush1.msra.mxu0 0.0
        %1486 = vmatprep.subr.mxu0 0.0
        %1487 = vmatpush1.msra.mxu0 0.0
        %1488 = vmatprep.subr.mxu0 0.0
        %1489 = vmatpush1.msra.mxu0 0.0
        %1490 = vmatprep.subr.mxu0 0.0
        %1491 = vmatpush1.msra.mxu0 0.0
        %1492 = vmatprep.subr.mxu0 0.0
        %1493 = vmatpush1.msra.mxu0 0.0
        %1494 = vmatprep.subr.mxu0 0.0
        %1495 = vmatpush1.msra.mxu0 0.0
        %1496 = vmatprep.subr.mxu0 0.0
        %1497 = vmatpush1.msra.mxu0 0.0
        %1498 = vmatprep.subr.mxu0 0.0
        %1499 = vmatpush1.msra.mxu0 0.0
        %1500 = vmatprep.subr.mxu0 0.0
        %1501 = vmatpush1.msra.mxu0 %v1465
        %1502 = vmatprep.subr.mxu0 0.0
        %1503 = vmatpush2.msra.mxu0 0.0
        %1504 = vmatprep.subr.mxu0 0.0
        %1505 = vmatpush2.msra.mxu0 0.0
        %1506 = vmatprep.subr.mxu0 0.0
        %1507 = vmatpush2.msra.mxu0 0.0
        %1508 = vmatprep.subr.mxu0 0.0
        %1509 = vmatpush2.msra.mxu0 0.0
        %1510 = vmatprep.subr.mxu0 0.0
        %1511 = vmatpush2.msra.mxu0 0.0
        %1512 = vmatprep.subr.mxu0 0.0
        %1513 = vmatpush2.msra.mxu0 0.0
        %1514 = vmatprep.subr.mxu0 0.0
        %1515 = vmatpush2.msra.mxu0 0.0
        %1516 = vmatprep.subr.mxu0 0.0
        %1517 = vmatpush2.msra.mxu0 0.0
        %1518 = vmatprep.subr.mxu0 0.0
        %1519 = vmatpush2.msra.mxu0 0.0
        %1520 = vmatprep.subr.mxu0 0.0
        %1521 = vmatpush2.msra.mxu0 0.0
        %1522 = vmatprep.subr.mxu0 0.0
        %1523 = vmatpush2.msra.mxu0 0.0
        %1524 = vmatprep.subr.mxu0 0.0
        %1525 = vmatpush2.msra.mxu0 0.0
        %1526 = vmatprep.subr.mxu0 0.0
        %1527 = vmatpush2.msra.mxu0 0.0
        %1528 = vmatprep.subr.mxu0 0.0
        %1529 = vmatpush2.msra.mxu0 0.0
        %1530 = vmatprep.subr.mxu0 0.0
        %1531 = vmatpush2.msra.mxu0 0.0
        %1532 = vmatprep.subr.mxu0 0.0
        %1533 = vmatpush2.msra.mxu0 0.0
        %1534 = vmatprep.mubr.f32.mxu0 0.0
        %1535 = vmatmul.mubr.f32.gmra.mxu0 %v1468
        %v1536 = vpop.f32.mrf.mxu0
        %v1537 = vadd.f32 0.0, %v1536
        %v1538 = vpop.f32.mrf.mxu0
        %1539 = vdwg.mxu0
        %v1541 = vsel %vm1202, %v1537, 0
        %1543 = vmatprep.subr.mxu0 0.0
        %1544 = vmatpush1.msra.mxu0 0.0
        %1545 = vmatprep.subr.mxu0 0.0
        %1546 = vmatpush1.msra.mxu0 0.0
        %1547 = vmatprep.subr.mxu0 0.0
        %1548 = vmatpush1.msra.mxu0 0.0
        %1549 = vmatprep.subr.mxu0 0.0
        %1550 = vmatpush1.msra.mxu0 0.0
        %1551 = vmatprep.subr.mxu0 0.0
        %1552 = vmatpush1.msra.mxu0 0.0
        %1553 = vmatprep.subr.mxu0 0.0
        %1554 = vmatpush1.msra.mxu0 0.0
        %1555 = vmatprep.subr.mxu0 0.0
        %1556 = vmatpush1.msra.mxu0 0.0
        %1557 = vmatprep.subr.mxu0 0.0
        %1558 = vmatpush1.msra.mxu0 0.0
        %1559 = vmatprep.subr.mxu0 0.0
        %1560 = vmatpush1.msra.mxu0 0.0
        %1561 = vmatprep.subr.mxu0 0.0
        %1562 = vmatpush1.msra.mxu0 0.0
        %1563 = vmatprep.subr.mxu0 0.0
        %1564 = vmatpush1.msra.mxu0 0.0
        %1565 = vmatprep.subr.mxu0 0.0
        %1566 = vmatpush1.msra.mxu0 0.0
        %1567 = vmatprep.subr.mxu0 0.0
        %1568 = vmatpush1.msra.mxu0 0.0
        %1569 = vmatprep.subr.mxu0 0.0
        %1570 = vmatpush1.msra.mxu0 0.0
        %1571 = vmatprep.subr.mxu0 0.0
        %1572 = vmatpush1.msra.mxu0 %v1201
        %1573 = vmatprep.subr.mxu0 0.0
        %1574 = vmatpush1.msra.mxu0 %v1200
        %1575 = vmatprep.subr.mxu0 0.0
        %1576 = vmatpush2.msra.mxu0 0.0
        %1577 = vmatprep.subr.mxu0 0.0
        %1578 = vmatpush2.msra.mxu0 0.0
        %1579 = vmatprep.subr.mxu0 0.0
        %1580 = vmatpush2.msra.mxu0 0.0
        %1581 = vmatprep.subr.mxu0 0.0
        %1582 = vmatpush2.msra.mxu0 0.0
        %1583 = vmatprep.subr.mxu0 0.0
        %1584 = vmatpush2.msra.mxu0 0.0
        %1585 = vmatprep.subr.mxu0 0.0
        %1586 = vmatpush2.msra.mxu0 0.0
        %1587 = vmatprep.subr.mxu0 0.0
        %1588 = vmatpush2.msra.mxu0 0.0
        %1589 = vmatprep.subr.mxu0 0.0
        %1590 = vmatpush2.msra.mxu0 0.0
        %1591 = vmatprep.subr.mxu0 0.0
        %1592 = vmatpush2.msra.mxu0 0.0
        %1593 = vmatprep.subr.mxu0 0.0
        %1594 = vmatpush2.msra.mxu0 0.0
        %1595 = vmatprep.subr.mxu0 0.0
        %1596 = vmatpush2.msra.mxu0 0.0
        %1597 = vmatprep.subr.mxu0 0.0
        %1598 = vmatpush2.msra.mxu0 0.0
        %1599 = vmatprep.subr.mxu0 0.0
        %1600 = vmatpush2.msra.mxu0 0.0
        %1601 = vmatprep.subr.mxu0 0.0
        %1602 = vmatpush2.msra.mxu0 0.0
        %1603 = vmatprep.subr.mxu0 0.0
        %1604 = vmatpush2.msra.mxu0 0.0
        %1605 = vmatprep.subr.mxu0 0.0
        %1606 = vmatpush2.msra.mxu0 0.0
        %1607 = vmatprep.mubr.f32.mxu0 0.0
        %1608 = vmatmul.mubr.f32.gmra.mxu0 %v1541
        %v1609 = vpop.f32.mrf.mxu0
        %v1610 = vadd.f32 0.0, %v1609
        %v1611 = vpop.f32.mrf.mxu0
        %1612 = vdwg.mxu0
        %v1614 = vsel %vm1202, %v1369, 0
        %1616 = vmatprep.subr.mxu0 0.0
        %1617 = vmatpush1.msra.mxu0 0.0
        %1618 = vmatprep.subr.mxu0 0.0
        %1619 = vmatpush1.msra.mxu0 0.0
        %1620 = vmatprep.subr.mxu0 0.0
        %1621 = vmatpush1.msra.mxu0 0.0
        %1622 = vmatprep.subr.mxu0 0.0
        %1623 = vmatpush1.msra.mxu0 0.0
        %1624 = vmatprep.subr.mxu0 0.0
        %1625 = vmatpush1.msra.mxu0 0.0
        %1626 = vmatprep.subr.mxu0 0.0
        %1627 = vmatpush1.msra.mxu0 0.0
        %1628 = vmatprep.subr.mxu0 0.0
        %1629 = vmatpush1.msra.mxu0 0.0
        %1630 = vmatprep.subr.mxu0 0.0
        %1631 = vmatpush1.msra.mxu0 0.0
        %1632 = vmatprep.subr.mxu0 0.0
        %1633 = vmatpush1.msra.mxu0 0.0
        %1634 = vmatprep.subr.mxu0 0.0
        %1635 = vmatpush1.msra.mxu0 0.0
        %1636 = vmatprep.subr.mxu0 0.0
        %1637 = vmatpush1.msra.mxu0 0.0
        %1638 = vmatprep.subr.mxu0 0.0
        %1639 = vmatpush1.msra.mxu0 0.0
        %1640 = vmatprep.subr.mxu0 0.0
        %1641 = vmatpush1.msra.mxu0 0.0
        %1642 = vmatprep.subr.mxu0 0.0
        %1643 = vmatpush1.msra.mxu0 0.0
        %1644 = vmatprep.subr.mxu0 0.0
        %1645 = vmatpush1.msra.mxu0 %v1199
        %1646 = vmatprep.subr.mxu0 0.0
        %1647 = vmatpush1.msra.mxu0 %v1198
        %1648 = vmatprep.subr.mxu0 0.0
        %1649 = vmatpush2.msra.mxu0 0.0
        %1650 = vmatprep.subr.mxu0 0.0
        %1651 = vmatpush2.msra.mxu0 0.0
        %1652 = vmatprep.subr.mxu0 0.0
        %1653 = vmatpush2.msra.mxu0 0.0
        %1654 = vmatprep.subr.mxu0 0.0
        %1655 = vmatpush2.msra.mxu0 0.0
        %1656 = vmatprep.subr.mxu0 0.0
        %1657 = vmatpush2.msra.mxu0 0.0
        %1658 = vmatprep.subr.mxu0 0.0
        %1659 = vmatpush2.msra.mxu0 0.0
        %1660 = vmatprep.subr.mxu0 0.0
        %1661 = vmatpush2.msra.mxu0 0.0
        %1662 = vmatprep.subr.mxu0 0.0
        %1663 = vmatpush2.msra.mxu0 0.0
        %1664 = vmatprep.subr.mxu0 0.0
        %1665 = vmatpush2.msra.mxu0 0.0
        %1666 = vmatprep.subr.mxu0 0.0
        %1667 = vmatpush2.msra.mxu0 0.0
        %1668 = vmatprep.subr.mxu0 0.0
        %1669 = vmatpush2.msra.mxu0 0.0
        %1670 = vmatprep.subr.mxu0 0.0
        %1671 = vmatpush2.msra.mxu0 0.0
        %1672 = vmatprep.subr.mxu0 0.0
        %1673 = vmatpush2.msra.mxu0 0.0
        %1674 = vmatprep.subr.mxu0 0.0
        %1675 = vmatpush2.msra.mxu0 0.0
        %1676 = vmatprep.subr.mxu0 0.0
        %1677 = vmatpush2.msra.mxu0 0.0
        %1678 = vmatprep.subr.mxu0 0.0
        %1679 = vmatpush2.msra.mxu0 0.0
        %1680 = vmatprep.mubr.f32.mxu0 0.0
        %1681 = vmatmul.mubr.f32.gmra.mxu0 %v1614
        %v1682 = vpop.f32.mrf.mxu0
        %v1683 = vadd.f32 %v1610, %v1682
        %v1684 = vpop.f32.mrf.mxu0
        %1685 = vdwg.mxu0
        %v1686 = vld [vmem:[%s917] sm:$0x1]
        %v1688 = vlaneseq
        %v1689 = vshrl.u32 %v1688, 7
        %v1690 = vsub.s32 0, %v1689
        %v1691 = vrot.slane %v1686, %v1690
        %v1693 = vadd.f32 %v1683, %v1691
        %v1694 = vadd.f32 %v948, %v1693
        %v1695 = vsel %vm962, %v1694, 0.0
        %1696 = vadd.xlane.f32.xlu0 %v1695
        %v1697 = vpop.xlane.xlu0 %1696
        %v1698 = vrcp.pop 32.0
        %v1699 = vmul.f32 %v1697, %v1698
        %v1700 = vsub.f32 %v1694, %v1699
        %v1701 = vmul.f32 %v1700, %v1700
        %v1702 = vsel %vm962, %v1701, 0.0
        %1703 = vadd.xlane.f32.xlu0 %v1702
        %v1704 = vpop.xlane.xlu0 %1703
        %v1705 = vmul.f32 %v1704, %v1698
        %v1706 = vadd.f32 %v1705, 1e-06
        %v1707 = vrsqrt.pop %v1706
        %v1708 = vmul.f32 %v1700, %v1707
        %v1709 = vld [vmem:[%s920] sm:$0x1]
        %v1711 = vlaneseq
        %v1712 = vshrl.u32 %v1711, 7
        %v1713 = vsub.s32 0, %v1712
        %v1714 = vrot.slane %v1709, %v1713
        %v1716 = vmul.f32 %v1708, %v1714
        %v1717 = vld [vmem:[%s923] sm:$0x1]
        %v1719 = vlaneseq
        %v1720 = vshrl.u32 %v1719, 7
        %v1721 = vsub.s32 0, %v1720
        %v1722 = vrot.slane %v1717, %v1721
        %v1724 = vadd.f32 %v1716, %v1722
        %1726 = vset.pattern.permute.xlu0 0
        %1727 = vperm.xlu0 %1726, %v949
        %v1728 = vpop.permute.xlu0 %1727
        %v1730 = vmul.f32 %v1724, %v1728
        %v1731 = vld [vmem:[%s759] sm:$0xff]
        %v1732 = vld [vmem:[%s759 + $0x8] sm:$0xff]
        %v1733 = vld [vmem:[%s759 + $0x10] sm:$0xff]
        %v1734 = vld [vmem:[%s759 + $0x18] sm:$0xff]
        %v1735 = vld [vmem:[%s926] sm:$0x1]
        %v1737 = vlaneseq
        %v1738 = vshrl.u32 %v1737, 7
        %v1739 = vsub.s32 0, %v1738
        %v1740 = vrot.slane %v1735, %v1739
        %v1743 = vsel %vm962, %v1730, 0
        %1745 = vmatprep.subr.mxu0 0.0
        %1746 = vmatpush1.msra.mxu0 0.0
        %1747 = vmatprep.subr.mxu0 0.0
        %1748 = vmatpush1.msra.mxu0 0.0
        %1749 = vmatprep.subr.mxu0 0.0
        %1750 = vmatpush1.msra.mxu0 0.0
        %1751 = vmatprep.subr.mxu0 0.0
        %1752 = vmatpush1.msra.mxu0 0.0
        %1753 = vmatprep.subr.mxu0 0.0
        %1754 = vmatpush1.msra.mxu0 0.0
        %1755 = vmatprep.subr.mxu0 0.0
        %1756 = vmatpush1.msra.mxu0 0.0
        %1757 = vmatprep.subr.mxu0 0.0
        %1758 = vmatpush1.msra.mxu0 0.0
        %1759 = vmatprep.subr.mxu0 0.0
        %1760 = vmatpush1.msra.mxu0 0.0
        %1761 = vmatprep.subr.mxu0 0.0
        %1762 = vmatpush1.msra.mxu0 0.0
        %1763 = vmatprep.subr.mxu0 0.0
        %1764 = vmatpush1.msra.mxu0 0.0
        %1765 = vmatprep.subr.mxu0 0.0
        %1766 = vmatpush1.msra.mxu0 0.0
        %1767 = vmatprep.subr.mxu0 0.0
        %1768 = vmatpush1.msra.mxu0 0.0
        %1769 = vmatprep.subr.mxu0 0.0
        %1770 = vmatpush1.msra.mxu0 %v1734
        %1771 = vmatprep.subr.mxu0 0.0
        %1772 = vmatpush1.msra.mxu0 %v1733
        %1773 = vmatprep.subr.mxu0 0.0
        %1774 = vmatpush1.msra.mxu0 %v1732
        %1775 = vmatprep.subr.mxu0 0.0
        %1776 = vmatpush1.msra.mxu0 %v1731
        %1777 = vmatprep.subr.mxu0 0.0
        %1778 = vmatpush2.msra.mxu0 0.0
        %1779 = vmatprep.subr.mxu0 0.0
        %1780 = vmatpush2.msra.mxu0 0.0
        %1781 = vmatprep.subr.mxu0 0.0
        %1782 = vmatpush2.msra.mxu0 0.0
        %1783 = vmatprep.subr.mxu0 0.0
        %1784 = vmatpush2.msra.mxu0 0.0
        %1785 = vmatprep.subr.mxu0 0.0
        %1786 = vmatpush2.msra.mxu0 0.0
        %1787 = vmatprep.subr.mxu0 0.0
        %1788 = vmatpush2.msra.mxu0 0.0
        %1789 = vmatprep.subr.mxu0 0.0
        %1790 = vmatpush2.msra.mxu0 0.0
        %1791 = vmatprep.subr.mxu0 0.0
        %1792 = vmatpush2.msra.mxu0 0.0
        %1793 = vmatprep.subr.mxu0 0.0
        %1794 = vmatpush2.msra.mxu0 0.0
        %1795 = vmatprep.subr.mxu0 0.0
        %1796 = vmatpush2.msra.mxu0 0.0
        %1797 = vmatprep.subr.mxu0 0.0
        %1798 = vmatpush2.msra.mxu0 0.0
        %1799 = vmatprep.subr.mxu0 0.0
        %1800 = vmatpush2.msra.mxu0 0.0
        %1801 = vmatprep.subr.mxu0 0.0
        %1802 = vmatpush2.msra.mxu0 0.0
        %1803 = vmatprep.subr.mxu0 0.0
        %1804 = vmatpush2.msra.mxu0 0.0
        %1805 = vmatprep.subr.mxu0 0.0
        %1806 = vmatpush2.msra.mxu0 0.0
        %1807 = vmatprep.subr.mxu0 0.0
        %1808 = vmatpush2.msra.mxu0 0.0
        %1809 = vmatprep.mubr.f32.mxu0 0.0
        %1810 = vmatmul.mubr.f32.gmra.mxu0 %v1743
        %v1811 = vpop.f32.mrf.mxu0
        %v1812 = vadd.f32 %v1740, %v1811
        %v1813 = vpop.f32.mrf.mxu0
        %1814 = vdwg.mxu0
        %v1815 = vmax.f32 %v1812, 0.0
        %v1816 = vld [vmem:[%s931] sm:$0xff]
        %v1817 = vld [vmem:[%s931 + $0x8] sm:$0xff]
        %v1818 = vld [vmem:[%s931 + $0x10] sm:$0xff]
        %v1819 = vld [vmem:[%s931 + $0x18] sm:$0xff]
        %v1820 = vld [vmem:[%s931 + $0x20] sm:$0xff]
        %v1821 = vld [vmem:[%s931 + $0x28] sm:$0xff]
        %v1822 = vld [vmem:[%s931 + $0x30] sm:$0xff]
        %v1823 = vld [vmem:[%s931 + $0x38] sm:$0xff]
        %v1824 = vld [vmem:[%s934] sm:$0x1]
        %v1826 = vlaneseq
        %v1827 = vshrl.u32 %v1826, 7
        %v1828 = vsub.s32 0, %v1827
        %v1829 = vrot.slane %v1824, %v1828
        %vm1831 = vcmask 523264
        %v1833 = vsel %vm1831, %v1815, 0
        %1835 = vmatprep.subr.mxu0 0.0
        %1836 = vmatpush1.msra.mxu0 0.0
        %1837 = vmatprep.subr.mxu0 0.0
        %1838 = vmatpush1.msra.mxu0 0.0
        %1839 = vmatprep.subr.mxu0 0.0
        %1840 = vmatpush1.msra.mxu0 0.0
        %1841 = vmatprep.subr.mxu0 0.0
        %1842 = vmatpush1.msra.mxu0 0.0
        %1843 = vmatprep.subr.mxu0 0.0
        %1844 = vmatpush1.msra.mxu0 0.0
        %1845 = vmatprep.subr.mxu0 0.0
        %1846 = vmatpush1.msra.mxu0 0.0
        %1847 = vmatprep.subr.mxu0 0.0
        %1848 = vmatpush1.msra.mxu0 0.0
        %1849 = vmatprep.subr.mxu0 0.0
        %1850 = vmatpush1.msra.mxu0 0.0
        %1851 = vmatprep.subr.mxu0 0.0
        %1852 = vmatpush1.msra.mxu0 %v1823
        %1853 = vmatprep.subr.mxu0 0.0
        %1854 = vmatpush1.msra.mxu0 %v1822
        %1855 = vmatprep.subr.mxu0 0.0
        %1856 = vmatpush1.msra.mxu0 %v1821
        %1857 = vmatprep.subr.mxu0 0.0
        %1858 = vmatpush1.msra.mxu0 %v1820
        %1859 = vmatprep.subr.mxu0 0.0
        %1860 = vmatpush1.msra.mxu0 %v1819
        %1861 = vmatprep.subr.mxu0 0.0
        %1862 = vmatpush1.msra.mxu0 %v1818
        %1863 = vmatprep.subr.mxu0 0.0
        %1864 = vmatpush1.msra.mxu0 %v1817
        %1865 = vmatprep.subr.mxu0 0.0
        %1866 = vmatpush1.msra.mxu0 %v1816
        %1867 = vmatprep.subr.mxu0 0.0
        %1868 = vmatpush2.msra.mxu0 0.0
        %1869 = vmatprep.subr.mxu0 0.0
        %1870 = vmatpush2.msra.mxu0 0.0
        %1871 = vmatprep.subr.mxu0 0.0
        %1872 = vmatpush2.msra.mxu0 0.0
        %1873 = vmatprep.subr.mxu0 0.0
        %1874 = vmatpush2.msra.mxu0 0.0
        %1875 = vmatprep.subr.mxu0 0.0
        %1876 = vmatpush2.msra.mxu0 0.0
        %1877 = vmatprep.subr.mxu0 0.0
        %1878 = vmatpush2.msra.mxu0 0.0
        %1879 = vmatprep.subr.mxu0 0.0
        %1880 = vmatpush2.msra.mxu0 0.0
        %1881 = vmatprep.subr.mxu0 0.0
        %1882 = vmatpush2.msra.mxu0 0.0
        %1883 = vmatprep.subr.mxu0 0.0
        %1884 = vmatpush2.msra.mxu0 0.0
        %1885 = vmatprep.subr.mxu0 0.0
        %1886 = vmatpush2.msra.mxu0 0.0
        %1887 = vmatprep.subr.mxu0 0.0
        %1888 = vmatpush2.msra.mxu0 0.0
        %1889 = vmatprep.subr.mxu0 0.0
        %1890 = vmatpush2.msra.mxu0 0.0
        %1891 = vmatprep.subr.mxu0 0.0
        %1892 = vmatpush2.msra.mxu0 0.0
        %1893 = vmatprep.subr.mxu0 0.0
        %1894 = vmatpush2.msra.mxu0 0.0
        %1895 = vmatprep.subr.mxu0 0.0
        %1896 = vmatpush2.msra.mxu0 0.0
        %1897 = vmatprep.subr.mxu0 0.0
        %1898 = vmatpush2.msra.mxu0 0.0
        %1899 = vmatprep.mubr.f32.mxu0 0.0
        %1900 = vmatmul.mubr.f32.gmra.mxu0 %v1833
        %v1901 = vpop.f32.mrf.mxu0
        %v1902 = vadd.f32 %v1829, %v1901
        %v1903 = vpop.f32.mrf.mxu0
        %1904 = vdwg.mxu0
        %v1905 = vadd.f32 %v1730, %v1902
        %v1906 = vsel %vm962, %v1905, 0.0
        %1907 = vadd.xlane.f32.xlu0 %v1906
        %v1908 = vpop.xlane.xlu0 %1907
        %v1909 = vmul.f32 %v1908, %v1698
        %v1910 = vsub.f32 %v1905, %v1909
        %v1911 = vmul.f32 %v1910, %v1910
        %v1912 = vsel %vm962, %v1911, 0.0
        %1913 = vadd.xlane.f32.xlu0 %v1912
        %v1914 = vpop.xlane.xlu0 %1913
        %v1915 = vmul.f32 %v1914, %v1698
        %v1916 = vadd.f32 %v1915, 1e-06
        %v1917 = vrsqrt.pop %v1916
        %v1918 = vmul.f32 %v1910, %v1917
        %v1919 = vld [vmem:[%s937] sm:$0x1]
        %v1921 = vlaneseq
        %v1922 = vshrl.u32 %v1921, 7
        %v1923 = vsub.s32 0, %v1922
        %v1924 = vrot.slane %v1919, %v1923
        %v1926 = vmul.f32 %v1918, %v1924
        %v1927 = vld [vmem:[%s940] sm:$0x1]
        %v1929 = vlaneseq
        %v1930 = vshrl.u32 %v1929, 7
        %v1931 = vsub.s32 0, %v1930
        %v1932 = vrot.slane %v1927, %v1931
        %v1934 = vadd.f32 %v1926, %v1932
        %v1935 = vmul.f32 %v1934, %v1728
        %1936 = vst.msk [vmem:[%s879] sm:$0xff] %vm962, %v1935
        %s1937 = sand.u32 %s553, 1
        %s1938 = scalar_lea.sflag [#allocation4], %s1937
        %s1939 = sand.u32 %s553, 1
        %s1940 = smul.addr %s1939, 8
        %s1941 = scalar_lea.vmem [#allocation7], %s1940
        // Predicated region
        $region109: #{tpu_custom_call.1} parent=95 // pred_check
          %p1942 = pneg %p563
        $region110: #{tpu_custom_call.1} parent=95 // pred_check_branch
          %1944 = sbr.rel (%p1942) target = $region112
        $region111: #{tpu_custom_call.1} parent=95 // pred_region
          %s1946 = ssub.s32 128, 128
          %1947 = vsyncadd %s1938, %s1946
          %s1948 = smul.addr %s43, 128
          %s1949 = scalar_lea.hbm %s19, %s1948
          %s1951 = sshll.u32 %s1941, 4
          %s1952 = int_to_ptr.vmem [resolvable:$true] %s1951
          %1954 = dma.vmem_to_hbm [thread:$0]  %s1952, 128, %s1949, %s1938
        $region112: #{tpu_custom_call.1} parent=95 // pred_fallthru
          _
      $region96: #{tpu_custom_call.1} parent=5 // pred_fallthru
        _
      %p1955 = scmp.le.s32.totalorder 2, %s34
      // Predicated region
      $region113: #{tpu_custom_call.1} parent=5 // pred_check
        %p1956 = pneg %p1955
      $region114: #{tpu_custom_call.1} parent=5 // pred_check_branch
        %1958 = sbr.rel (%p1956) target = $region116
      $region115: #{tpu_custom_call.1} parent=5 // pred_region
        %s1959 = ssub.s32 %s34, 2
        // Predicated region
        $region117: #{tpu_custom_call.1} parent=115 // pred_check
          %p1960 = pneg %p569
        $region118: #{tpu_custom_call.1} parent=115 // pred_check_branch
          %1962 = sbr.rel (%p1960) target = $region120
        $region119: #{tpu_custom_call.1} parent=115 // pred_region
          %s1963 = sand.u32 %s554, 1
          %s1964 = scalar_lea.sflag [#allocation4], %s1963
          %s1965 = sand.u32 %s554, 1
          %s1966 = smul.addr %s1965, 8
          %s1967 = scalar_lea.vmem [#allocation7], %s1966
          %1968 = dma.done %s1964, 128
        $region120: #{tpu_custom_call.1} parent=115 // pred_fallthru
          _
      $region116: #{tpu_custom_call.1} parent=5 // pred_fallthru
        _
    $region6: #{tpu_custom_call.1} parent=1 // loop_footer
      %s38 = sadd.s32 1, %s34
    $region7: #{tpu_custom_call.1} parent=1 // loop_footer_branch
      %33 = sbr.rel target = $region3
    $region8: #{tpu_custom_call.1} parent=1 // loop_exit
      _
    %1969 = vsyncpa [#allocation3], 1
    %s1970 = scalar_lea.sflag [#allocation3], 1
    %1971 = vsyncpa %s1970, 1
    %1972 = vsyncpa [#allocation6], 1
    %s1973 = scalar_lea.sflag [#allocation6], 1
    %1974 = vsyncpa %s1973, 1
    %1975 = vsyncpa [#allocation4], 1
    %s1976 = scalar_lea.sflag [#allocation4], 1
    %1977 = vsyncpa %s1976, 1

</llo_original>
